<compile_context>
chip_gen: v5e
topology: v5e:2x2
jax: 0.10.0
libtpu: 0.0.40
codegen_flags: <defaults>
</compile_context>

<pallas_src>
import jax
import jax.numpy as jnp
from jax.experimental import pallas as pl
from jax.experimental.pallas import tpu as pltpu


# ----------------------------- Pallas kernel --------------------------------

def lstm_mlp_kernel(x_ref,
                    wih0_ref, whh0_ref, b0_ref,
                    wih1_ref, whh1_ref, b1_ref,
                    wffd_ref, bffd_ref,
                    wfcn_ref, bfcn_ref,
                    out_ref):
    """Gate column order is PyTorch's [i, f, g, o]; g columns pre-scaled by 2."""
    seq = x_ref.shape[0]
    H = whh0_ref.shape[0]            # whh0 is (H, 4H)

    whh0 = whh0_ref[...]
    wih1 = wih1_ref[...]
    whh1 = whh1_ref[...]
    b1 = b1_ref[...]

    # ---- hoisted layer-0 input projection: one (seq, in) x (in, 4H) matmul ----
    xw0 = (jnp.dot(x_ref[...], wih0_ref[...],
                   preferred_element_type=jnp.float32)
           + b0_ref[...])                                     # (seq, 4H), one vreg

    def gate_act(gates):
        # Single sigmoid over the full (1, 4H) row (one EUP push).  The g-gate
        # pre-activation was scaled by 2 in the wrapper, so
        #   2*sigmoid(2*raw_g) - 1 == tanh(raw_g)   (exact identity, VPU fma).
        sig = jax.nn.sigmoid(gates)
        i = sig[:, 0 * H:1 * H]
        f = sig[:, 1 * H:2 * H]
        g = 2.0 * sig[:, 2 * H:3 * H] - 1.0
        o = sig[:, 3 * H:4 * H]
        return i, f, o, g

    zeros = jnp.zeros((1, H), jnp.float32)
    h0, c0, h1, c1 = zeros, zeros, zeros, zeros
    # Layer-1 recurrent term for step 0 (h1 == 0 -> just the bias); thereafter
    # r1 for step t+1 is computed right after h1_t, OFF the critical chain.
    r1 = b1
    h1_hist = []

    # seq is small and static -> fully unrolled; all slice indices are static.
    for t in range(seq):
        # ----- layer 0: only the recurrent matmul is on the serial chain -----
        gates0 = xw0[t:t + 1, :] + jnp.dot(
            h0, whh0, preferred_element_type=jnp.float32)
        i0, f0, o0, g0 = gate_act(gates0)
        c0 = f0 * c0 + i0 * g0
        h0 = o0 * jnp.tanh(c0)

        # ----- layer 1: recurrent half (r1) was precomputed last step -----
        gates1 = jnp.dot(h0, wih1, preferred_element_type=jnp.float32) + r1
        i1, f1, o1, g1 = gate_act(gates1)
        c1 = f1 * c1 + i1 * g1
        h1 = o1 * jnp.tanh(c1)
        h1_hist.append(h1)

        # precompute next step's layer-1 recurrent term (overlaps with the
        # next step's layer-0 chain)
        if t + 1 < seq:
            r1 = jnp.dot(h1, whh1, preferred_element_type=jnp.float32) + b1

    # ---- hoisted MLP head: fcn(relu(ffd(h1))) over the whole sequence ----
    h1_all = jnp.concatenate(h1_hist, axis=0)                 # (seq, H)
    hid = jnp.maximum(
        jnp.dot(h1_all, wffd_ref[...], preferred_element_type=jnp.float32)
        + bffd_ref[...], 0.0)
    out_ref[...] = (jnp.dot(hid, wfcn_ref[...],
                            preferred_element_type=jnp.float32)
                    + bfcn_ref[...])


# ------------------------------- wrapper -------------------------------------

def _scale_g_columns(w, H):
    """Scale the g-gate block (PyTorch order [i, f, g, o] -> cols 2H:3H) by 2.

    Enables g = 2*sigmoid(2x) - 1 == tanh(x) in-kernel (single sigmoid slab).
    Pure layout/constant plumbing, no semantics change.
    """
    return jnp.concatenate(
        [w[..., 0:2 * H], 2.0 * w[..., 2 * H:3 * H], w[..., 3 * H:4 * H]],
        axis=-1)


def rnn_model_forward(x, params):
    seq, _ = x.shape
    H = params["w_hh0"].shape[0]
    output_dim = params["fcn_b"].shape[-1]

    wih0 = _scale_g_columns(params["w_ih0"], H)
    whh0 = _scale_g_columns(params["w_hh0"], H)
    b0 = _scale_g_columns(params["b0"], H)
    wih1 = _scale_g_columns(params["w_ih1"], H)
    whh1 = _scale_g_columns(params["w_hh1"], H)
    b1 = _scale_g_columns(params["b1"], H)

    args = (x, wih0, whh0, b0, wih1, whh1, b1,
            params["ffd_w"], params["ffd_b"],
            params["fcn_w"], params["fcn_b"])
    in_specs = [pl.BlockSpec(memory_space=pltpu.MemorySpace.VMEM) for _ in args]
    out_spec = pl.BlockSpec(memory_space=pltpu.MemorySpace.VMEM)

    return pl.pallas_call(
        lstm_mlp_kernel,
        out_shape=jax.ShapeDtypeStruct((seq, output_dim), jnp.float32),
        in_specs=in_specs,
        out_specs=out_spec,
    )(*args)


# ------------------------ deterministic parameter init -----------------------

def init_params(key, input_dim, hidden_dim, output_dim):
    k = 1.0 / jnp.sqrt(hidden_dim).astype(jnp.float32)
    keys = jax.random.split(key, 16)

    def u(kk, shape):
        return jax.random.uniform(kk, shape, jnp.float32, -k, k)

    # LSTM layer 0 (input_dim -> hidden), layer 1 (hidden -> hidden).
    # PyTorch stores weight_ih as (4H, in); we pre-transpose to (in, 4H).
    w_ih0 = u(keys[0], (input_dim, 4 * hidden_dim))
    w_hh0 = u(keys[1], (hidden_dim, 4 * hidden_dim))
    b_ih0 = u(keys[2], (1, 4 * hidden_dim))
    b_hh0 = u(keys[3], (1, 4 * hidden_dim))
    w_ih1 = u(keys[4], (hidden_dim, 4 * hidden_dim))
    w_hh1 = u(keys[5], (hidden_dim, 4 * hidden_dim))
    b_ih1 = u(keys[6], (1, 4 * hidden_dim))
    b_hh1 = u(keys[7], (1, 4 * hidden_dim))
    # ffd: Linear(hidden, hidden); fcn: Linear(hidden, output_dim); transposed.
    ffd_w = u(keys[8], (hidden_dim, hidden_dim))
    ffd_b = u(keys[9], (1, hidden_dim))
    fcn_w = u(keys[10], (hidden_dim, output_dim))
    fcn_b = u(keys[11], (1, output_dim))

    return dict(
        w_ih0=w_ih0, w_hh0=w_hh0, b0=b_ih0 + b_hh0,
        w_ih1=w_ih1, w_hh1=w_hh1, b1=b_ih1 + b_hh1,
        ffd_w=ffd_w, ffd_b=ffd_b, fcn_w=fcn_w, fcn_b=fcn_b,
    )


# ------------------------- pure-JAX reference (check) ------------------------

def rnn_model_reference(x, p):
    """Standard PyTorch gate order [i, f, g, o]; uses the raw (unscaled) params."""
    H = p["w_hh0"].shape[0]

    def cell(x_t, h, c, wih, whh, b):
        gates = x_t @ wih + h @ whh + b
        i = jax.nn.sigmoid(gates[:, 0 * H:1 * H])
        f = jax.nn.sigmoid(gates[:, 1 * H:2 * H])
        g = jnp.tanh(gates[:, 2 * H:3 * H])
        o = jax.nn.sigmoid(gates[:, 3 * H:4 * H])
        c = f * c + i * g
        h = o * jnp.tanh(c)
        return h, c

    h0 = c0 = h1 = c1 = jnp.zeros((1, H), jnp.float32)
    ys = []
    for t in range(x.shape[0]):
        x_t = x[t:t + 1, :]
        h0, c0 = cell(x_t, h0, c0, p["w_ih0"], p["w_hh0"], p["b0"])
        h1, c1 = cell(h0, h1, c1, p["w_ih1"], p["w_hh1"], p["b1"])
        hid = jnp.maximum(h1 @ p["ffd_w"] + p["ffd_b"], 0.0)
        ys.append(hid @ p["fcn_w"] + p["fcn_b"])
    return jnp.concatenate(ys, axis=0)


# ----------------------------------- main ------------------------------------

if __name__ == "__main__":
    seq_len, input_dim, hidden_dim, output_dim, layers_num = 8, 16, 32, 8, 2

    key = jax.random.PRNGKey(0)
    kx, kp = jax.random.split(key)
    x = jax.random.normal(kx, (seq_len, input_dim), jnp.float32)
    params = init_params(kp, input_dim, hidden_dim, output_dim)

    out = rnn_model_forward(x, params)
    out = jax.block_until_ready(out)

    ref = rnn_model_reference(x, params)
    assert out.shape == (seq_len, output_dim)
    # Tolerance slightly looser than 1e-5: tanh(x) is computed as
    # 2*sigmoid(2x)-1 in-kernel (mathematically identical, different rounding).
    assert jnp.allclose(out, ref, atol=1e-4, rtol=1e-4), "mismatch vs reference"

    print("KERNEL_OK")
</pallas_src>

<mosaic_0001>
module attributes {stable_mosaic.version = 11 : i64} {
  func.func @lstm_mlp_kernel(%arg0: memref<8x16xf32, #tpu.memory_space<vmem>>, %arg1: memref<16x128xf32, #tpu.memory_space<vmem>>, %arg2: memref<32x128xf32, #tpu.memory_space<vmem>>, %arg3: memref<1x128xf32, #tpu.memory_space<vmem>>, %arg4: memref<32x128xf32, #tpu.memory_space<vmem>>, %arg5: memref<32x128xf32, #tpu.memory_space<vmem>>, %arg6: memref<1x128xf32, #tpu.memory_space<vmem>>, %arg7: memref<32x32xf32, #tpu.memory_space<vmem>>, %arg8: memref<1x32xf32, #tpu.memory_space<vmem>>, %arg9: memref<32x8xf32, #tpu.memory_space<vmem>>, %arg10: memref<1x8xf32, #tpu.memory_space<vmem>>, %arg11: memref<8x8xf32, #tpu.memory_space<vmem>>) attributes {dimension_semantics = [], scalar_prefetch = 0 : i64, scratch_operands = 0 : i64, tpu.core_type = #tpu.core_type<tc>} {
    %c0 = arith.constant 0 : index
    %c0_0 = arith.constant 0 : index
    %0 = vector.load %arg2[%c0, %c0_0] : memref<32x128xf32, #tpu.memory_space<vmem>>, vector<32x128xf32>
    %c0_1 = arith.constant 0 : index
    %c0_2 = arith.constant 0 : index
    %1 = vector.load %arg4[%c0_1, %c0_2] : memref<32x128xf32, #tpu.memory_space<vmem>>, vector<32x128xf32>
    %c0_3 = arith.constant 0 : index
    %c0_4 = arith.constant 0 : index
    %2 = vector.load %arg5[%c0_3, %c0_4] : memref<32x128xf32, #tpu.memory_space<vmem>>, vector<32x128xf32>
    %c0_5 = arith.constant 0 : index
    %c0_6 = arith.constant 0 : index
    %3 = vector.load %arg6[%c0_5, %c0_6] : memref<1x128xf32, #tpu.memory_space<vmem>>, vector<1x128xf32>
    %c0_7 = arith.constant 0 : index
    %c0_8 = arith.constant 0 : index
    %4 = vector.load %arg0[%c0_7, %c0_8] : memref<8x16xf32, #tpu.memory_space<vmem>>, vector<8x16xf32>
    %c0_9 = arith.constant 0 : index
    %c0_10 = arith.constant 0 : index
    %5 = vector.load %arg1[%c0_9, %c0_10] : memref<16x128xf32, #tpu.memory_space<vmem>>, vector<16x128xf32>
    %cst = arith.constant dense<0.000000e+00> : vector<8x128xf32>
    %6 = tpu.matmul %4, %5, %cst {dimension_numbers = #tpu.dot_dimension_numbers<[1], [0], [0], [1], [0, 0, 1, 1], [], []>} : vector<8x16xf32>, vector<16x128xf32>, vector<8x128xf32> -> vector<8x128xf32>
    %c0_11 = arith.constant 0 : index
    %c0_12 = arith.constant 0 : index
    %7 = vector.load %arg3[%c0_11, %c0_12] : memref<1x128xf32, #tpu.memory_space<vmem>>, vector<1x128xf32>
    %8 = vector.broadcast %7 : vector<1x128xf32> to vector<8x128xf32>
    %9 = arith.addf %6, %8 : vector<8x128xf32>
    %cst_13 = arith.constant 0.000000e+00 : f32
    %10 = vector.broadcast %cst_13 : f32 to vector<1x32xf32>
    %11 = vector.extract_strided_slice %9 {offsets = [0, 0], sizes = [1, 128], strides = [1, 1]} : vector<8x128xf32> to vector<1x128xf32>
    %cst_14 = arith.constant dense<0.000000e+00> : vector<1x128xf32>
    %12 = tpu.matmul %10, %0, %cst_14 {dimension_numbers = #tpu.dot_dimension_numbers<[1], [0], [0], [1], [0, 0, 1, 1], [], []>} : vector<1x32xf32>, vector<32x128xf32>, vector<1x128xf32> -> vector<1x128xf32>
    %13 = arith.addf %11, %12 : vector<1x128xf32>
    %14 = arith.negf %13 : vector<1x128xf32>
    %15 = math.exp %14 : vector<1x128xf32>
    %cst_15 = arith.constant 1.000000e+00 : f32
    %16 = vector.broadcast %cst_15 : f32 to vector<1x128xf32>
    %17 = arith.addf %16, %15 : vector<1x128xf32>
    %18 = arith.divf %16, %17 : vector<1x128xf32>
    %19 = vector.extract_strided_slice %18 {offsets = [0, 0], sizes = [1, 32], strides = [1, 1]} : vector<1x128xf32> to vector<1x32xf32>
    %20 = vector.extract_strided_slice %18 {offsets = [0, 32], sizes = [1, 32], strides = [1, 1]} : vector<1x128xf32> to vector<1x32xf32>
    %21 = vector.extract_strided_slice %18 {offsets = [0, 64], sizes = [1, 32], strides = [1, 1]} : vector<1x128xf32> to vector<1x32xf32>
    %cst_16 = arith.constant 2.000000e+00 : f32
    %22 = vector.broadcast %cst_16 : f32 to vector<1x32xf32>
    %23 = arith.mulf %22, %21 : vector<1x32xf32>
    %cst_17 = arith.constant 1.000000e+00 : f32
    %24 = vector.broadcast %cst_17 : f32 to vector<1x32xf32>
    %25 = arith.subf %23, %24 : vector<1x32xf32>
    %26 = vector.extract_strided_slice %18 {offsets = [0, 96], sizes = [1, 32], strides = [1, 1]} : vector<1x128xf32> to vector<1x32xf32>
    %27 = arith.mulf %20, %10 : vector<1x32xf32>
    %28 = arith.mulf %19, %25 : vector<1x32xf32>
    %29 = arith.addf %27, %28 : vector<1x32xf32>
    %30 = math.tanh %29 : vector<1x32xf32>
    %31 = arith.mulf %26, %30 : vector<1x32xf32>
    %cst_18 = arith.constant dense<0.000000e+00> : vector<1x128xf32>
    %32 = tpu.matmul %31, %1, %cst_18 {dimension_numbers = #tpu.dot_dimension_numbers<[1], [0], [0], [1], [0, 0, 1, 1], [], []>} : vector<1x32xf32>, vector<32x128xf32>, vector<1x128xf32> -> vector<1x128xf32>
    %33 = arith.addf %32, %3 : vector<1x128xf32>
    %34 = arith.negf %33 : vector<1x128xf32>
    %35 = math.exp %34 : vector<1x128xf32>
    %cst_19 = arith.constant 1.000000e+00 : f32
    %36 = vector.broadcast %cst_19 : f32 to vector<1x128xf32>
    %37 = arith.addf %36, %35 : vector<1x128xf32>
    %38 = arith.divf %36, %37 : vector<1x128xf32>
    %39 = vector.extract_strided_slice %38 {offsets = [0, 0], sizes = [1, 32], strides = [1, 1]} : vector<1x128xf32> to vector<1x32xf32>
    %40 = vector.extract_strided_slice %38 {offsets = [0, 32], sizes = [1, 32], strides = [1, 1]} : vector<1x128xf32> to vector<1x32xf32>
    %41 = vector.extract_strided_slice %38 {offsets = [0, 64], sizes = [1, 32], strides = [1, 1]} : vector<1x128xf32> to vector<1x32xf32>
    %cst_20 = arith.constant 2.000000e+00 : f32
    %42 = vector.broadcast %cst_20 : f32 to vector<1x32xf32>
    %43 = arith.mulf %42, %41 : vector<1x32xf32>
    %cst_21 = arith.constant 1.000000e+00 : f32
    %44 = vector.broadcast %cst_21 : f32 to vector<1x32xf32>
    %45 = arith.subf %43, %44 : vector<1x32xf32>
    %46 = vector.extract_strided_slice %38 {offsets = [0, 96], sizes = [1, 32], strides = [1, 1]} : vector<1x128xf32> to vector<1x32xf32>
    %47 = arith.mulf %40, %10 : vector<1x32xf32>
    %48 = arith.mulf %39, %45 : vector<1x32xf32>
    %49 = arith.addf %47, %48 : vector<1x32xf32>
    %50 = math.tanh %49 : vector<1x32xf32>
    %51 = arith.mulf %46, %50 : vector<1x32xf32>
    %cst_22 = arith.constant dense<0.000000e+00> : vector<1x128xf32>
    %52 = tpu.matmul %51, %2, %cst_22 {dimension_numbers = #tpu.dot_dimension_numbers<[1], [0], [0], [1], [0, 0, 1, 1], [], []>} : vector<1x32xf32>, vector<32x128xf32>, vector<1x128xf32> -> vector<1x128xf32>
    %53 = arith.addf %52, %3 : vector<1x128xf32>
    %54 = vector.extract_strided_slice %9 {offsets = [1, 0], sizes = [1, 128], strides = [1, 1]} : vector<8x128xf32> to vector<1x128xf32>
    %cst_23 = arith.constant dense<0.000000e+00> : vector<1x128xf32>
    %55 = tpu.matmul %31, %0, %cst_23 {dimension_numbers = #tpu.dot_dimension_numbers<[1], [0], [0], [1], [0, 0, 1, 1], [], []>} : vector<1x32xf32>, vector<32x128xf32>, vector<1x128xf32> -> vector<1x128xf32>
    %56 = arith.addf %54, %55 : vector<1x128xf32>
    %57 = arith.negf %56 : vector<1x128xf32>
    %58 = math.exp %57 : vector<1x128xf32>
    %cst_24 = arith.constant 1.000000e+00 : f32
    %59 = vector.broadcast %cst_24 : f32 to vector<1x128xf32>
    %60 = arith.addf %59, %58 : vector<1x128xf32>
    %61 = arith.divf %59, %60 : vector<1x128xf32>
    %62 = vector.extract_strided_slice %61 {offsets = [0, 0], sizes = [1, 32], strides = [1, 1]} : vector<1x128xf32> to vector<1x32xf32>
    %63 = vector.extract_strided_slice %61 {offsets = [0, 32], sizes = [1, 32], strides = [1, 1]} : vector<1x128xf32> to vector<1x32xf32>
    %64 = vector.extract_strided_slice %61 {offsets = [0, 64], sizes = [1, 32], strides = [1, 1]} : vector<1x128xf32> to vector<1x32xf32>
    %cst_25 = arith.constant 2.000000e+00 : f32
    %65 = vector.broadcast %cst_25 : f32 to vector<1x32xf32>
    %66 = arith.mulf %65, %64 : vector<1x32xf32>
    %cst_26 = arith.constant 1.000000e+00 : f32
    %67 = vector.broadcast %cst_26 : f32 to vector<1x32xf32>
    %68 = arith.subf %66, %67 : vector<1x32xf32>
    %69 = vector.extract_strided_slice %61 {offsets = [0, 96], sizes = [1, 32], strides = [1, 1]} : vector<1x128xf32> to vector<1x32xf32>
    %70 = arith.mulf %63, %29 : vector<1x32xf32>
    %71 = arith.mulf %62, %68 : vector<1x32xf32>
    %72 = arith.addf %70, %71 : vector<1x32xf32>
    %73 = math.tanh %72 : vector<1x32xf32>
    %74 = arith.mulf %69, %73 : vector<1x32xf32>
    %cst_27 = arith.constant dense<0.000000e+00> : vector<1x128xf32>
    %75 = tpu.matmul %74, %1, %cst_27 {dimension_numbers = #tpu.dot_dimension_numbers<[1], [0], [0], [1], [0, 0, 1, 1], [], []>} : vector<1x32xf32>, vector<32x128xf32>, vector<1x128xf32> -> vector<1x128xf32>
    %76 = arith.addf %75, %53 : vector<1x128xf32>
    %77 = arith.negf %76 : vector<1x128xf32>
    %78 = math.exp %77 : vector<1x128xf32>
    %cst_28 = arith.constant 1.000000e+00 : f32
    %79 = vector.broadcast %cst_28 : f32 to vector<1x128xf32>
    %80 = arith.addf %79, %78 : vector<1x128xf32>
    %81 = arith.divf %79, %80 : vector<1x128xf32>
    %82 = vector.extract_strided_slice %81 {offsets = [0, 0], sizes = [1, 32], strides = [1, 1]} : vector<1x128xf32> to vector<1x32xf32>
    %83 = vector.extract_strided_slice %81 {offsets = [0, 32], sizes = [1, 32], strides = [1, 1]} : vector<1x128xf32> to vector<1x32xf32>
    %84 = vector.extract_strided_slice %81 {offsets = [0, 64], sizes = [1, 32], strides = [1, 1]} : vector<1x128xf32> to vector<1x32xf32>
    %cst_29 = arith.constant 2.000000e+00 : f32
    %85 = vector.broadcast %cst_29 : f32 to vector<1x32xf32>
    %86 = arith.mulf %85, %84 : vector<1x32xf32>
    %cst_30 = arith.constant 1.000000e+00 : f32
    %87 = vector.broadcast %cst_30 : f32 to vector<1x32xf32>
    %88 = arith.subf %86, %87 : vector<1x32xf32>
    %89 = vector.extract_strided_slice %81 {offsets = [0, 96], sizes = [1, 32], strides = [1, 1]} : vector<1x128xf32> to vector<1x32xf32>
    %90 = arith.mulf %83, %49 : vector<1x32xf32>
    %91 = arith.mulf %82, %88 : vector<1x32xf32>
    %92 = arith.addf %90, %91 : vector<1x32xf32>
    %93 = math.tanh %92 : vector<1x32xf32>
    %94 = arith.mulf %89, %93 : vector<1x32xf32>
    %cst_31 = arith.constant dense<0.000000e+00> : vector<1x128xf32>
    %95 = tpu.matmul %94, %2, %cst_31 {dimension_numbers = #tpu.dot_dimension_numbers<[1], [0], [0], [1], [0, 0, 1, 1], [], []>} : vector<1x32xf32>, vector<32x128xf32>, vector<1x128xf32> -> vector<1x128xf32>
    %96 = arith.addf %95, %3 : vector<1x128xf32>
    %97 = vector.extract_strided_slice %9 {offsets = [2, 0], sizes = [1, 128], strides = [1, 1]} : vector<8x128xf32> to vector<1x128xf32>
    %cst_32 = arith.constant dense<0.000000e+00> : vector<1x128xf32>
    %98 = tpu.matmul %74, %0, %cst_32 {dimension_numbers = #tpu.dot_dimension_numbers<[1], [0], [0], [1], [0, 0, 1, 1], [], []>} : vector<1x32xf32>, vector<32x128xf32>, vector<1x128xf32> -> vector<1x128xf32>
    %99 = arith.addf %97, %98 : vector<1x128xf32>
    %100 = arith.negf %99 : vector<1x128xf32>
    %101 = math.exp %100 : vector<1x128xf32>
    %cst_33 = arith.constant 1.000000e+00 : f32
    %102 = vector.broadcast %cst_33 : f32 to vector<1x128xf32>
    %103 = arith.addf %102, %101 : vector<1x128xf32>
    %104 = arith.divf %102, %103 : vector<1x128xf32>
    %105 = vector.extract_strided_slice %104 {offsets = [0, 0], sizes = [1, 32], strides = [1, 1]} : vector<1x128xf32> to vector<1x32xf32>
    %106 = vector.extract_strided_slice %104 {offsets = [0, 32], sizes = [1, 32], strides = [1, 1]} : vector<1x128xf32> to vector<1x32xf32>
    %107 = vector.extract_strided_slice %104 {offsets = [0, 64], sizes = [1, 32], strides = [1, 1]} : vector<1x128xf32> to vector<1x32xf32>
    %cst_34 = arith.constant 2.000000e+00 : f32
    %108 = vector.broadcast %cst_34 : f32 to vector<1x32xf32>
    %109 = arith.mulf %108, %107 : vector<1x32xf32>
    %cst_35 = arith.constant 1.000000e+00 : f32
    %110 = vector.broadcast %cst_35 : f32 to vector<1x32xf32>
    %111 = arith.subf %109, %110 : vector<1x32xf32>
    %112 = vector.extract_strided_slice %104 {offsets = [0, 96], sizes = [1, 32], strides = [1, 1]} : vector<1x128xf32> to vector<1x32xf32>
    %113 = arith.mulf %106, %72 : vector<1x32xf32>
    %114 = arith.mulf %105, %111 : vector<1x32xf32>
    %115 = arith.addf %113, %114 : vector<1x32xf32>
    %116 = math.tanh %115 : vector<1x32xf32>
    %117 = arith.mulf %112, %116 : vector<1x32xf32>
    %cst_36 = arith.constant dense<0.000000e+00> : vector<1x128xf32>
    %118 = tpu.matmul %117, %1, %cst_36 {dimension_numbers = #tpu.dot_dimension_numbers<[1], [0], [0], [1], [0, 0, 1, 1], [], []>} : vector<1x32xf32>, vector<32x128xf32>, vector<1x128xf32> -> vector<1x128xf32>
    %119 = arith.addf %118, %96 : vector<1x128xf32>
    %120 = arith.negf %119 : vector<1x128xf32>
    %121 = math.exp %120 : vector<1x128xf32>
    %cst_37 = arith.constant 1.000000e+00 : f32
    %122 = vector.broadcast %cst_37 : f32 to vector<1x128xf32>
    %123 = arith.addf %122, %121 : vector<1x128xf32>
    %124 = arith.divf %122, %123 : vector<1x128xf32>
    %125 = vector.extract_strided_slice %124 {offsets = [0, 0], sizes = [1, 32], strides = [1, 1]} : vector<1x128xf32> to vector<1x32xf32>
    %126 = vector.extract_strided_slice %124 {offsets = [0, 32], sizes = [1, 32], strides = [1, 1]} : vector<1x128xf32> to vector<1x32xf32>
    %127 = vector.extract_strided_slice %124 {offsets = [0, 64], sizes = [1, 32], strides = [1, 1]} : vector<1x128xf32> to vector<1x32xf32>
    %cst_38 = arith.constant 2.000000e+00 : f32
    %128 = vector.broadcast %cst_38 : f32 to vector<1x32xf32>
    %129 = arith.mulf %128, %127 : vector<1x32xf32>
    %cst_39 = arith.constant 1.000000e+00 : f32
    %130 = vector.broadcast %cst_39 : f32 to vector<1x32xf32>
    %131 = arith.subf %129, %130 : vector<1x32xf32>
    %132 = vector.extract_strided_slice %124 {offsets = [0, 96], sizes = [1, 32], strides = [1, 1]} : vector<1x128xf32> to vector<1x32xf32>
    %133 = arith.mulf %126, %92 : vector<1x32xf32>
    %134 = arith.mulf %125, %131 : vector<1x32xf32>
    %135 = arith.addf %133, %134 : vector<1x32xf32>
    %136 = math.tanh %135 : vector<1x32xf32>
    %137 = arith.mulf %132, %136 : vector<1x32xf32>
    %cst_40 = arith.constant dense<0.000000e+00> : vector<1x128xf32>
    %138 = tpu.matmul %137, %2, %cst_40 {dimension_numbers = #tpu.dot_dimension_numbers<[1], [0], [0], [1], [0, 0, 1, 1], [], []>} : vector<1x32xf32>, vector<32x128xf32>, vector<1x128xf32> -> vector<1x128xf32>
    %139 = arith.addf %138, %3 : vector<1x128xf32>
    %140 = vector.extract_strided_slice %9 {offsets = [3, 0], sizes = [1, 128], strides = [1, 1]} : vector<8x128xf32> to vector<1x128xf32>
    %cst_41 = arith.constant dense<0.000000e+00> : vector<1x128xf32>
    %141 = tpu.matmul %117, %0, %cst_41 {dimension_numbers = #tpu.dot_dimension_numbers<[1], [0], [0], [1], [0, 0, 1, 1], [], []>} : vector<1x32xf32>, vector<32x128xf32>, vector<1x128xf32> -> vector<1x128xf32>
    %142 = arith.addf %140, %141 : vector<1x128xf32>
    %143 = arith.negf %142 : vector<1x128xf32>
    %144 = math.exp %143 : vector<1x128xf32>
    %cst_42 = arith.constant 1.000000e+00 : f32
    %145 = vector.broadcast %cst_42 : f32 to vector<1x128xf32>
    %146 = arith.addf %145, %144 : vector<1x128xf32>
    %147 = arith.divf %145, %146 : vector<1x128xf32>
    %148 = vector.extract_strided_slice %147 {offsets = [0, 0], sizes = [1, 32], strides = [1, 1]} : vector<1x128xf32> to vector<1x32xf32>
    %149 = vector.extract_strided_slice %147 {offsets = [0, 32], sizes = [1, 32], strides = [1, 1]} : vector<1x128xf32> to vector<1x32xf32>
    %150 = vector.extract_strided_slice %147 {offsets = [0, 64], sizes = [1, 32], strides = [1, 1]} : vector<1x128xf32> to vector<1x32xf32>
    %cst_43 = arith.constant 2.000000e+00 : f32
    %151 = vector.broadcast %cst_43 : f32 to vector<1x32xf32>
    %152 = arith.mulf %151, %150 : vector<1x32xf32>
    %cst_44 = arith.constant 1.000000e+00 : f32
    %153 = vector.broadcast %cst_44 : f32 to vector<1x32xf32>
    %154 = arith.subf %152, %153 : vector<1x32xf32>
    %155 = vector.extract_strided_slice %147 {offsets = [0, 96], sizes = [1, 32], strides = [1, 1]} : vector<1x128xf32> to vector<1x32xf32>
    %156 = arith.mulf %149, %115 : vector<1x32xf32>
    %157 = arith.mulf %148, %154 : vector<1x32xf32>
    %158 = arith.addf %156, %157 : vector<1x32xf32>
    %159 = math.tanh %158 : vector<1x32xf32>
    %160 = arith.mulf %155, %159 : vector<1x32xf32>
    %cst_45 = arith.constant dense<0.000000e+00> : vector<1x128xf32>
    %161 = tpu.matmul %160, %1, %cst_45 {dimension_numbers = #tpu.dot_dimension_numbers<[1], [0], [0], [1], [0, 0, 1, 1], [], []>} : vector<1x32xf32>, vector<32x128xf32>, vector<1x128xf32> -> vector<1x128xf32>
    %162 = arith.addf %161, %139 : vector<1x128xf32>
    %163 = arith.negf %162 : vector<1x128xf32>
    %164 = math.exp %163 : vector<1x128xf32>
    %cst_46 = arith.constant 1.000000e+00 : f32
    %165 = vector.broadcast %cst_46 : f32 to vector<1x128xf32>
    %166 = arith.addf %165, %164 : vector<1x128xf32>
    %167 = arith.divf %165, %166 : vector<1x128xf32>
    %168 = vector.extract_strided_slice %167 {offsets = [0, 0], sizes = [1, 32], strides = [1, 1]} : vector<1x128xf32> to vector<1x32xf32>
    %169 = vector.extract_strided_slice %167 {offsets = [0, 32], sizes = [1, 32], strides = [1, 1]} : vector<1x128xf32> to vector<1x32xf32>
    %170 = vector.extract_strided_slice %167 {offsets = [0, 64], sizes = [1, 32], strides = [1, 1]} : vector<1x128xf32> to vector<1x32xf32>
    %cst_47 = arith.constant 2.000000e+00 : f32
    %171 = vector.broadcast %cst_47 : f32 to vector<1x32xf32>
    %172 = arith.mulf %171, %170 : vector<1x32xf32>
    %cst_48 = arith.constant 1.000000e+00 : f32
    %173 = vector.broadcast %cst_48 : f32 to vector<1x32xf32>
    %174 = arith.subf %172, %173 : vector<1x32xf32>
    %175 = vector.extract_strided_slice %167 {offsets = [0, 96], sizes = [1, 32], strides = [1, 1]} : vector<1x128xf32> to vector<1x32xf32>
    %176 = arith.mulf %169, %135 : vector<1x32xf32>
    %177 = arith.mulf %168, %174 : vector<1x32xf32>
    %178 = arith.addf %176, %177 : vector<1x32xf32>
    %179 = math.tanh %178 : vector<1x32xf32>
    %180 = arith.mulf %175, %179 : vector<1x32xf32>
    %cst_49 = arith.constant dense<0.000000e+00> : vector<1x128xf32>
    %181 = tpu.matmul %180, %2, %cst_49 {dimension_numbers = #tpu.dot_dimension_numbers<[1], [0], [0], [1], [0, 0, 1, 1], [], []>} : vector<1x32xf32>, vector<32x128xf32>, vector<1x128xf32> -> vector<1x128xf32>
    %182 = arith.addf %181, %3 : vector<1x128xf32>
    %183 = vector.extract_strided_slice %9 {offsets = [4, 0], sizes = [1, 128], strides = [1, 1]} : vector<8x128xf32> to vector<1x128xf32>
    %cst_50 = arith.constant dense<0.000000e+00> : vector<1x128xf32>
    %184 = tpu.matmul %160, %0, %cst_50 {dimension_numbers = #tpu.dot_dimension_numbers<[1], [0], [0], [1], [0, 0, 1, 1], [], []>} : vector<1x32xf32>, vector<32x128xf32>, vector<1x128xf32> -> vector<1x128xf32>
    %185 = arith.addf %183, %184 : vector<1x128xf32>
    %186 = arith.negf %185 : vector<1x128xf32>
    %187 = math.exp %186 : vector<1x128xf32>
    %cst_51 = arith.constant 1.000000e+00 : f32
    %188 = vector.broadcast %cst_51 : f32 to vector<1x128xf32>
    %189 = arith.addf %188, %187 : vector<1x128xf32>
    %190 = arith.divf %188, %189 : vector<1x128xf32>
    %191 = vector.extract_strided_slice %190 {offsets = [0, 0], sizes = [1, 32], strides = [1, 1]} : vector<1x128xf32> to vector<1x32xf32>
    %192 = vector.extract_strided_slice %190 {offsets = [0, 32], sizes = [1, 32], strides = [1, 1]} : vector<1x128xf32> to vector<1x32xf32>
    %193 = vector.extract_strided_slice %190 {offsets = [0, 64], sizes = [1, 32], strides = [1, 1]} : vector<1x128xf32> to vector<1x32xf32>
    %cst_52 = arith.constant 2.000000e+00 : f32
    %194 = vector.broadcast %cst_52 : f32 to vector<1x32xf32>
    %195 = arith.mulf %194, %193 : vector<1x32xf32>
    %cst_53 = arith.constant 1.000000e+00 : f32
    %196 = vector.broadcast %cst_53 : f32 to vector<1x32xf32>
    %197 = arith.subf %195, %196 : vector<1x32xf32>
    %198 = vector.extract_strided_slice %190 {offsets = [0, 96], sizes = [1, 32], strides = [1, 1]} : vector<1x128xf32> to vector<1x32xf32>
    %199 = arith.mulf %192, %158 : vector<1x32xf32>
    %200 = arith.mulf %191, %197 : vector<1x32xf32>
    %201 = arith.addf %199, %200 : vector<1x32xf32>
    %202 = math.tanh %201 : vector<1x32xf32>
    %203 = arith.mulf %198, %202 : vector<1x32xf32>
    %cst_54 = arith.constant dense<0.000000e+00> : vector<1x128xf32>
    %204 = tpu.matmul %203, %1, %cst_54 {dimension_numbers = #tpu.dot_dimension_numbers<[1], [0], [0], [1], [0, 0, 1, 1], [], []>} : vector<1x32xf32>, vector<32x128xf32>, vector<1x128xf32> -> vector<1x128xf32>
    %205 = arith.addf %204, %182 : vector<1x128xf32>
    %206 = arith.negf %205 : vector<1x128xf32>
    %207 = math.exp %206 : vector<1x128xf32>
    %cst_55 = arith.constant 1.000000e+00 : f32
    %208 = vector.broadcast %cst_55 : f32 to vector<1x128xf32>
    %209 = arith.addf %208, %207 : vector<1x128xf32>
    %210 = arith.divf %208, %209 : vector<1x128xf32>
    %211 = vector.extract_strided_slice %210 {offsets = [0, 0], sizes = [1, 32], strides = [1, 1]} : vector<1x128xf32> to vector<1x32xf32>
    %212 = vector.extract_strided_slice %210 {offsets = [0, 32], sizes = [1, 32], strides = [1, 1]} : vector<1x128xf32> to vector<1x32xf32>
    %213 = vector.extract_strided_slice %210 {offsets = [0, 64], sizes = [1, 32], strides = [1, 1]} : vector<1x128xf32> to vector<1x32xf32>
    %cst_56 = arith.constant 2.000000e+00 : f32
    %214 = vector.broadcast %cst_56 : f32 to vector<1x32xf32>
    %215 = arith.mulf %214, %213 : vector<1x32xf32>
    %cst_57 = arith.constant 1.000000e+00 : f32
    %216 = vector.broadcast %cst_57 : f32 to vector<1x32xf32>
    %217 = arith.subf %215, %216 : vector<1x32xf32>
    %218 = vector.extract_strided_slice %210 {offsets = [0, 96], sizes = [1, 32], strides = [1, 1]} : vector<1x128xf32> to vector<1x32xf32>
    %219 = arith.mulf %212, %178 : vector<1x32xf32>
    %220 = arith.mulf %211, %217 : vector<1x32xf32>
    %221 = arith.addf %219, %220 : vector<1x32xf32>
    %222 = math.tanh %221 : vector<1x32xf32>
    %223 = arith.mulf %218, %222 : vector<1x32xf32>
    %cst_58 = arith.constant dense<0.000000e+00> : vector<1x128xf32>
    %224 = tpu.matmul %223, %2, %cst_58 {dimension_numbers = #tpu.dot_dimension_numbers<[1], [0], [0], [1], [0, 0, 1, 1], [], []>} : vector<1x32xf32>, vector<32x128xf32>, vector<1x128xf32> -> vector<1x128xf32>
    %225 = arith.addf %224, %3 : vector<1x128xf32>
    %226 = vector.extract_strided_slice %9 {offsets = [5, 0], sizes = [1, 128], strides = [1, 1]} : vector<8x128xf32> to vector<1x128xf32>
    %cst_59 = arith.constant dense<0.000000e+00> : vector<1x128xf32>
    %227 = tpu.matmul %203, %0, %cst_59 {dimension_numbers = #tpu.dot_dimension_numbers<[1], [0], [0], [1], [0, 0, 1, 1], [], []>} : vector<1x32xf32>, vector<32x128xf32>, vector<1x128xf32> -> vector<1x128xf32>
    %228 = arith.addf %226, %227 : vector<1x128xf32>
    %229 = arith.negf %228 : vector<1x128xf32>
    %230 = math.exp %229 : vector<1x128xf32>
    %cst_60 = arith.constant 1.000000e+00 : f32
    %231 = vector.broadcast %cst_60 : f32 to vector<1x128xf32>
    %232 = arith.addf %231, %230 : vector<1x128xf32>
    %233 = arith.divf %231, %232 : vector<1x128xf32>
    %234 = vector.extract_strided_slice %233 {offsets = [0, 0], sizes = [1, 32], strides = [1, 1]} : vector<1x128xf32> to vector<1x32xf32>
    %235 = vector.extract_strided_slice %233 {offsets = [0, 32], sizes = [1, 32], strides = [1, 1]} : vector<1x128xf32> to vector<1x32xf32>
    %236 = vector.extract_strided_slice %233 {offsets = [0, 64], sizes = [1, 32], strides = [1, 1]} : vector<1x128xf32> to vector<1x32xf32>
    %cst_61 = arith.constant 2.000000e+00 : f32
    %237 = vector.broadcast %cst_61 : f32 to vector<1x32xf32>
    %238 = arith.mulf %237, %236 : vector<1x32xf32>
    %cst_62 = arith.constant 1.000000e+00 : f32
    %239 = vector.broadcast %cst_62 : f32 to vector<1x32xf32>
    %240 = arith.subf %238, %239 : vector<1x32xf32>
    %241 = vector.extract_strided_slice %233 {offsets = [0, 96], sizes = [1, 32], strides = [1, 1]} : vector<1x128xf32> to vector<1x32xf32>
    %242 = arith.mulf %235, %201 : vector<1x32xf32>
    %243 = arith.mulf %234, %240 : vector<1x32xf32>
    %244 = arith.addf %242, %243 : vector<1x32xf32>
    %245 = math.tanh %244 : vector<1x32xf32>
    %246 = arith.mulf %241, %245 : vector<1x32xf32>
    %cst_63 = arith.constant dense<0.000000e+00> : vector<1x128xf32>
    %247 = tpu.matmul %246, %1, %cst_63 {dimension_numbers = #tpu.dot_dimension_numbers<[1], [0], [0], [1], [0, 0, 1, 1], [], []>} : vector<1x32xf32>, vector<32x128xf32>, vector<1x128xf32> -> vector<1x128xf32>
    %248 = arith.addf %247, %225 : vector<1x128xf32>
    %249 = arith.negf %248 : vector<1x128xf32>
    %250 = math.exp %249 : vector<1x128xf32>
    %cst_64 = arith.constant 1.000000e+00 : f32
    %251 = vector.broadcast %cst_64 : f32 to vector<1x128xf32>
    %252 = arith.addf %251, %250 : vector<1x128xf32>
    %253 = arith.divf %251, %252 : vector<1x128xf32>
    %254 = vector.extract_strided_slice %253 {offsets = [0, 0], sizes = [1, 32], strides = [1, 1]} : vector<1x128xf32> to vector<1x32xf32>
    %255 = vector.extract_strided_slice %253 {offsets = [0, 32], sizes = [1, 32], strides = [1, 1]} : vector<1x128xf32> to vector<1x32xf32>
    %256 = vector.extract_strided_slice %253 {offsets = [0, 64], sizes = [1, 32], strides = [1, 1]} : vector<1x128xf32> to vector<1x32xf32>
    %cst_65 = arith.constant 2.000000e+00 : f32
    %257 = vector.broadcast %cst_65 : f32 to vector<1x32xf32>
    %258 = arith.mulf %257, %256 : vector<1x32xf32>
    %cst_66 = arith.constant 1.000000e+00 : f32
    %259 = vector.broadcast %cst_66 : f32 to vector<1x32xf32>
    %260 = arith.subf %258, %259 : vector<1x32xf32>
    %261 = vector.extract_strided_slice %253 {offsets = [0, 96], sizes = [1, 32], strides = [1, 1]} : vector<1x128xf32> to vector<1x32xf32>
    %262 = arith.mulf %255, %221 : vector<1x32xf32>
    %263 = arith.mulf %254, %260 : vector<1x32xf32>
    %264 = arith.addf %262, %263 : vector<1x32xf32>
    %265 = math.tanh %264 : vector<1x32xf32>
    %266 = arith.mulf %261, %265 : vector<1x32xf32>
    %cst_67 = arith.constant dense<0.000000e+00> : vector<1x128xf32>
    %267 = tpu.matmul %266, %2, %cst_67 {dimension_numbers = #tpu.dot_dimension_numbers<[1], [0], [0], [1], [0, 0, 1, 1], [], []>} : vector<1x32xf32>, vector<32x128xf32>, vector<1x128xf32> -> vector<1x128xf32>
    %268 = arith.addf %267, %3 : vector<1x128xf32>
    %269 = vector.extract_strided_slice %9 {offsets = [6, 0], sizes = [1, 128], strides = [1, 1]} : vector<8x128xf32> to vector<1x128xf32>
    %cst_68 = arith.constant dense<0.000000e+00> : vector<1x128xf32>
    %270 = tpu.matmul %246, %0, %cst_68 {dimension_numbers = #tpu.dot_dimension_numbers<[1], [0], [0], [1], [0, 0, 1, 1], [], []>} : vector<1x32xf32>, vector<32x128xf32>, vector<1x128xf32> -> vector<1x128xf32>
    %271 = arith.addf %269, %270 : vector<1x128xf32>
    %272 = arith.negf %271 : vector<1x128xf32>
    %273 = math.exp %272 : vector<1x128xf32>
    %cst_69 = arith.constant 1.000000e+00 : f32
    %274 = vector.broadcast %cst_69 : f32 to vector<1x128xf32>
    %275 = arith.addf %274, %273 : vector<1x128xf32>
    %276 = arith.divf %274, %275 : vector<1x128xf32>
    %277 = vector.extract_strided_slice %276 {offsets = [0, 0], sizes = [1, 32], strides = [1, 1]} : vector<1x128xf32> to vector<1x32xf32>
    %278 = vector.extract_strided_slice %276 {offsets = [0, 32], sizes = [1, 32], strides = [1, 1]} : vector<1x128xf32> to vector<1x32xf32>
    %279 = vector.extract_strided_slice %276 {offsets = [0, 64], sizes = [1, 32], strides = [1, 1]} : vector<1x128xf32> to vector<1x32xf32>
    %cst_70 = arith.constant 2.000000e+00 : f32
    %280 = vector.broadcast %cst_70 : f32 to vector<1x32xf32>
    %281 = arith.mulf %280, %279 : vector<1x32xf32>
    %cst_71 = arith.constant 1.000000e+00 : f32
    %282 = vector.broadcast %cst_71 : f32 to vector<1x32xf32>
    %283 = arith.subf %281, %282 : vector<1x32xf32>
    %284 = vector.extract_strided_slice %276 {offsets = [0, 96], sizes = [1, 32], strides = [1, 1]} : vector<1x128xf32> to vector<1x32xf32>
    %285 = arith.mulf %278, %244 : vector<1x32xf32>
    %286 = arith.mulf %277, %283 : vector<1x32xf32>
    %287 = arith.addf %285, %286 : vector<1x32xf32>
    %288 = math.tanh %287 : vector<1x32xf32>
    %289 = arith.mulf %284, %288 : vector<1x32xf32>
    %cst_72 = arith.constant dense<0.000000e+00> : vector<1x128xf32>
    %290 = tpu.matmul %289, %1, %cst_72 {dimension_numbers = #tpu.dot_dimension_numbers<[1], [0], [0], [1], [0, 0, 1, 1], [], []>} : vector<1x32xf32>, vector<32x128xf32>, vector<1x128xf32> -> vector<1x128xf32>
    %291 = arith.addf %290, %268 : vector<1x128xf32>
    %292 = arith.negf %291 : vector<1x128xf32>
    %293 = math.exp %292 : vector<1x128xf32>
    %cst_73 = arith.constant 1.000000e+00 : f32
    %294 = vector.broadcast %cst_73 : f32 to vector<1x128xf32>
    %295 = arith.addf %294, %293 : vector<1x128xf32>
    %296 = arith.divf %294, %295 : vector<1x128xf32>
    %297 = vector.extract_strided_slice %296 {offsets = [0, 0], sizes = [1, 32], strides = [1, 1]} : vector<1x128xf32> to vector<1x32xf32>
    %298 = vector.extract_strided_slice %296 {offsets = [0, 32], sizes = [1, 32], strides = [1, 1]} : vector<1x128xf32> to vector<1x32xf32>
    %299 = vector.extract_strided_slice %296 {offsets = [0, 64], sizes = [1, 32], strides = [1, 1]} : vector<1x128xf32> to vector<1x32xf32>
    %cst_74 = arith.constant 2.000000e+00 : f32
    %300 = vector.broadcast %cst_74 : f32 to vector<1x32xf32>
    %301 = arith.mulf %300, %299 : vector<1x32xf32>
    %cst_75 = arith.constant 1.000000e+00 : f32
    %302 = vector.broadcast %cst_75 : f32 to vector<1x32xf32>
    %303 = arith.subf %301, %302 : vector<1x32xf32>
    %304 = vector.extract_strided_slice %296 {offsets = [0, 96], sizes = [1, 32], strides = [1, 1]} : vector<1x128xf32> to vector<1x32xf32>
    %305 = arith.mulf %298, %264 : vector<1x32xf32>
    %306 = arith.mulf %297, %303 : vector<1x32xf32>
    %307 = arith.addf %305, %306 : vector<1x32xf32>
    %308 = math.tanh %307 : vector<1x32xf32>
    %309 = arith.mulf %304, %308 : vector<1x32xf32>
    %cst_76 = arith.constant dense<0.000000e+00> : vector<1x128xf32>
    %310 = tpu.matmul %309, %2, %cst_76 {dimension_numbers = #tpu.dot_dimension_numbers<[1], [0], [0], [1], [0, 0, 1, 1], [], []>} : vector<1x32xf32>, vector<32x128xf32>, vector<1x128xf32> -> vector<1x128xf32>
    %311 = arith.addf %310, %3 : vector<1x128xf32>
    %312 = vector.extract_strided_slice %9 {offsets = [7, 0], sizes = [1, 128], strides = [1, 1]} : vector<8x128xf32> to vector<1x128xf32>
    %cst_77 = arith.constant dense<0.000000e+00> : vector<1x128xf32>
    %313 = tpu.matmul %289, %0, %cst_77 {dimension_numbers = #tpu.dot_dimension_numbers<[1], [0], [0], [1], [0, 0, 1, 1], [], []>} : vector<1x32xf32>, vector<32x128xf32>, vector<1x128xf32> -> vector<1x128xf32>
    %314 = arith.addf %312, %313 : vector<1x128xf32>
    %315 = arith.negf %314 : vector<1x128xf32>
    %316 = math.exp %315 : vector<1x128xf32>
    %cst_78 = arith.constant 1.000000e+00 : f32
    %317 = vector.broadcast %cst_78 : f32 to vector<1x128xf32>
    %318 = arith.addf %317, %316 : vector<1x128xf32>
    %319 = arith.divf %317, %318 : vector<1x128xf32>
    %320 = vector.extract_strided_slice %319 {offsets = [0, 0], sizes = [1, 32], strides = [1, 1]} : vector<1x128xf32> to vector<1x32xf32>
    %321 = vector.extract_strided_slice %319 {offsets = [0, 32], sizes = [1, 32], strides = [1, 1]} : vector<1x128xf32> to vector<1x32xf32>
    %322 = vector.extract_strided_slice %319 {offsets = [0, 64], sizes = [1, 32], strides = [1, 1]} : vector<1x128xf32> to vector<1x32xf32>
    %cst_79 = arith.constant 2.000000e+00 : f32
    %323 = vector.broadcast %cst_79 : f32 to vector<1x32xf32>
    %324 = arith.mulf %323, %322 : vector<1x32xf32>
    %cst_80 = arith.constant 1.000000e+00 : f32
    %325 = vector.broadcast %cst_80 : f32 to vector<1x32xf32>
    %326 = arith.subf %324, %325 : vector<1x32xf32>
    %327 = vector.extract_strided_slice %319 {offsets = [0, 96], sizes = [1, 32], strides = [1, 1]} : vector<1x128xf32> to vector<1x32xf32>
    %328 = arith.mulf %321, %287 : vector<1x32xf32>
    %329 = arith.mulf %320, %326 : vector<1x32xf32>
    %330 = arith.addf %328, %329 : vector<1x32xf32>
    %331 = math.tanh %330 : vector<1x32xf32>
    %332 = arith.mulf %327, %331 : vector<1x32xf32>
    %cst_81 = arith.constant dense<0.000000e+00> : vector<1x128xf32>
    %333 = tpu.matmul %332, %1, %cst_81 {dimension_numbers = #tpu.dot_dimension_numbers<[1], [0], [0], [1], [0, 0, 1, 1], [], []>} : vector<1x32xf32>, vector<32x128xf32>, vector<1x128xf32> -> vector<1x128xf32>
    %334 = arith.addf %333, %311 : vector<1x128xf32>
    %335 = arith.negf %334 : vector<1x128xf32>
    %336 = math.exp %335 : vector<1x128xf32>
    %cst_82 = arith.constant 1.000000e+00 : f32
    %337 = vector.broadcast %cst_82 : f32 to vector<1x128xf32>
    %338 = arith.addf %337, %336 : vector<1x128xf32>
    %339 = arith.divf %337, %338 : vector<1x128xf32>
    %340 = vector.extract_strided_slice %339 {offsets = [0, 0], sizes = [1, 32], strides = [1, 1]} : vector<1x128xf32> to vector<1x32xf32>
    %341 = vector.extract_strided_slice %339 {offsets = [0, 32], sizes = [1, 32], strides = [1, 1]} : vector<1x128xf32> to vector<1x32xf32>
    %342 = vector.extract_strided_slice %339 {offsets = [0, 64], sizes = [1, 32], strides = [1, 1]} : vector<1x128xf32> to vector<1x32xf32>
    %cst_83 = arith.constant 2.000000e+00 : f32
    %343 = vector.broadcast %cst_83 : f32 to vector<1x32xf32>
    %344 = arith.mulf %343, %342 : vector<1x32xf32>
    %cst_84 = arith.constant 1.000000e+00 : f32
    %345 = vector.broadcast %cst_84 : f32 to vector<1x32xf32>
    %346 = arith.subf %344, %345 : vector<1x32xf32>
    %347 = vector.extract_strided_slice %339 {offsets = [0, 96], sizes = [1, 32], strides = [1, 1]} : vector<1x128xf32> to vector<1x32xf32>
    %348 = arith.mulf %341, %307 : vector<1x32xf32>
    %349 = arith.mulf %340, %346 : vector<1x32xf32>
    %350 = arith.addf %348, %349 : vector<1x32xf32>
    %351 = math.tanh %350 : vector<1x32xf32>
    %352 = arith.mulf %347, %351 : vector<1x32xf32>
    %353 = tpu.concatenate %51, %94, %137, %180, %223, %266, %309, %352 in 0 : vector<1x32xf32>, vector<1x32xf32>, vector<1x32xf32>, vector<1x32xf32>, vector<1x32xf32>, vector<1x32xf32>, vector<1x32xf32>, vector<1x32xf32> -> vector<8x32xf32>
    %c0_85 = arith.constant 0 : index
    %c0_86 = arith.constant 0 : index
    %354 = vector.load %arg7[%c0_85, %c0_86] : memref<32x32xf32, #tpu.memory_space<vmem>>, vector<32x32xf32>
    %cst_87 = arith.constant dense<0.000000e+00> : vector<8x32xf32>
    %355 = tpu.matmul %353, %354, %cst_87 {dimension_numbers = #tpu.dot_dimension_numbers<[1], [0], [0], [1], [0, 0, 1, 1], [], []>} : vector<8x32xf32>, vector<32x32xf32>, vector<8x32xf32> -> vector<8x32xf32>
    %c0_88 = arith.constant 0 : index
    %c0_89 = arith.constant 0 : index
    %356 = vector.load %arg8[%c0_88, %c0_89] : memref<1x32xf32, #tpu.memory_space<vmem>>, vector<1x32xf32>
    %357 = vector.broadcast %356 : vector<1x32xf32> to vector<8x32xf32>
    %358 = arith.addf %355, %357 : vector<8x32xf32>
    %cst_90 = arith.constant 0.000000e+00 : f32
    %359 = vector.broadcast %cst_90 : f32 to vector<8x32xf32>
    %360 = arith.maximumf %358, %359 : vector<8x32xf32>
    %c0_91 = arith.constant 0 : index
    %c0_92 = arith.constant 0 : index
    %361 = vector.load %arg9[%c0_91, %c0_92] : memref<32x8xf32, #tpu.memory_space<vmem>>, vector<32x8xf32>
    %cst_93 = arith.constant dense<0.000000e+00> : vector<8x8xf32>
    %362 = tpu.matmul %360, %361, %cst_93 {dimension_numbers = #tpu.dot_dimension_numbers<[1], [0], [0], [1], [0, 0, 1, 1], [], []>} : vector<8x32xf32>, vector<32x8xf32>, vector<8x8xf32> -> vector<8x8xf32>
    %c0_94 = arith.constant 0 : index
    %c0_95 = arith.constant 0 : index
    %363 = vector.load %arg10[%c0_94, %c0_95] : memref<1x8xf32, #tpu.memory_space<vmem>>, vector<1x8xf32>
    %364 = vector.broadcast %363 : vector<1x8xf32> to vector<8x8xf32>
    %365 = arith.addf %362, %364 : vector<8x8xf32>
    %c0_96 = arith.constant 0 : index
    %c0_97 = arith.constant 0 : index
    %366 = vector.load %arg11[%c0_96, %c0_97] : memref<8x8xf32, #tpu.memory_space<vmem>>, vector<8x8xf32>
    tpu.vector_store %arg11[%c0_96, %c0_97], %365 {strides = array<i32>} : memref<8x8xf32, #tpu.memory_space<vmem>>, vector<8x8xf32>,
    return
  }
}

</mosaic_0001>

<llo_original>
// kernel: tpu_custom_call.1
$region0: #{tpu_custom_call.1}
  #allocation0 [shape = 'u32[]', space=smem, size = 0x4, offset = 0x4, fixed_abs, tag = 'smem constant byte address 0x4 - core index']
  #allocation1 [shape = 'u32[72,128]{1,0:T(1,128)}', space=vmem, size = 0x9000, scoped, tag = 'internal scratch']
  %s0 = inlined_call_operand.vmem [shape: f32[8,16], index: 0, kind: input, shape index: {}]
  %s1 = inlined_call_operand.hbm [shape: f32[16,128], index: 1, kind: input, shape index: {}]
  %s2 = inlined_call_operand.vmem [shape: f32[32,128], index: 2, kind: input, shape index: {}]
  %s3 = inlined_call_operand.hbm [shape: f32[1,128], index: 3, kind: input, shape index: {}]
  %s4 = inlined_call_operand.hbm [shape: f32[32,128], index: 4, kind: input, shape index: {}]
  %s5 = inlined_call_operand.hbm [shape: f32[32,128], index: 5, kind: input, shape index: {}]
  %s6 = inlined_call_operand.hbm [shape: f32[1,128], index: 6, kind: input, shape index: {}]
  %s7 = inlined_call_operand.hbm [shape: f32[32,32], index: 7, kind: input, shape index: {}]
  %s8 = inlined_call_operand.hbm [shape: f32[1,32], index: 8, kind: input, shape index: {}]
  %s9 = inlined_call_operand.vmem [shape: f32[32,8], index: 9, kind: input, shape index: {}]
  %s10 = inlined_call_operand.vmem [shape: f32[1,8], index: 10, kind: input, shape index: {}]
  %s11 = inlined_call_operand.hbm [shape: f32[8,8], index: 11, kind: output, shape index: {}]
  %s12 = sld [smem:[#allocation0]]
  $region82: #{tpu_custom_call.1} parent=0
    _
  %s14 = ssub.s32 1, %s12
  %s15 = scalar_select 0, %s14, %s12
  $region1: #{tpu_custom_call.1} parent=0
    #allocation2 [shape = 'u8[8192]{0}', space=vmem, size = 0x2000, scoped, tag = 'input window, operand 1, single buffered']
    #allocation3 [shape = 's32[1]{0}', space=sflag, size = 0x4, scoped, tag = 'scoped memory for tpu_custom_call.1']
    #allocation4 [shape = 's32[1]{0}', space=sflag, size = 0x4, scoped, tag = 'scoped memory for tpu_custom_call.1']
    #allocation5 [shape = 'u8[512]{0}', space=vmem, size = 0x400, scoped, tag = 'input window, operand 3, single buffered']
    #allocation6 [shape = 's32[1]{0}', space=sflag, size = 0x4, scoped, tag = 'scoped memory for tpu_custom_call.1']
    #allocation7 [shape = 'u8[16384]{0}', space=vmem, size = 0x4000, scoped, tag = 'input window, operand 4, single buffered']
    #allocation8 [shape = 'u8[16384]{0}', space=vmem, size = 0x4000, scoped, tag = 'input window, operand 5, single buffered']
    #allocation9 [shape = 's32[1]{0}', space=sflag, size = 0x4, scoped, tag = 'scoped memory for tpu_custom_call.1']
    #allocation10 [shape = 'u8[512]{0}', space=vmem, size = 0x400, scoped, tag = 'input window, operand 6, single buffered']
    #allocation11 [shape = 'u8[16384]{0}', space=vmem, size = 0x4000, scoped, tag = 'input window, operand 7, single buffered']
    #allocation12 [shape = 's32[1]{0}', space=sflag, size = 0x4, scoped, tag = 'scoped memory for tpu_custom_call.1']
    #allocation13 [shape = 'u8[512]{0}', space=vmem, size = 0x400, scoped, tag = 'input window, operand 8, single buffered']
    #allocation14 [shape = 'u8[4096]{0}', space=vmem, size = 0x1000, scoped, tag = 'output window, operand 0, single buffered']
    %16 = vsyncpa [#allocation3], 0
    %17 = vsyncpa [#allocation6], 0
    %18 = vsyncpa [#allocation9], 0
    %19 = vsyncpa [#allocation12], 0
    %20 = vsyncpa [#allocation4], 0
    // Predicated region
    $region2: #{tpu_custom_call.1} parent=1 // pred_check
      _
    $region3: #{tpu_custom_call.1} parent=1 // pred_check_branch
      %22 = sbr.rel (0) target = $region5
    $region4: #{tpu_custom_call.1} parent=1 // pred_region
      _
    $region5: #{tpu_custom_call.1} parent=1 // pred_fallthru
      _
    // Predicated region
    $region6: #{tpu_custom_call.1} parent=1 // pred_check
      _
    $region7: #{tpu_custom_call.1} parent=1 // pred_check_branch
      %24 = sbr.rel (0) target = $region9
    $region8: #{tpu_custom_call.1} parent=1 // pred_region
      %26 = vsyncadd [#allocation3], 0
      %s27 = sshll.u32 %s1, 4
      %s28 = int_to_ptr.hbm [resolvable:$true] %s27
      %s29 = sshll.u32 [#allocation2], 4
      %s30 = int_to_ptr.vmem [resolvable:$true] %s29
      %35 = dma.hbm_to_vmem [thread:$0]  %s28, 256, %s30, [#allocation3], 128, 128, 8
    $region9: #{tpu_custom_call.1} parent=1 // pred_fallthru
      _
    // Predicated region
    $region10: #{tpu_custom_call.1} parent=1 // pred_check
      _
    $region11: #{tpu_custom_call.1} parent=1 // pred_check_branch
      %37 = sbr.rel (0) target = $region13
    $region12: #{tpu_custom_call.1} parent=1 // pred_region
      _
    $region13: #{tpu_custom_call.1} parent=1 // pred_fallthru
      _
    // Predicated region
    $region14: #{tpu_custom_call.1} parent=1 // pred_check
      _
    $region15: #{tpu_custom_call.1} parent=1 // pred_check_branch
      %39 = sbr.rel (0) target = $region17
    $region16: #{tpu_custom_call.1} parent=1 // pred_region
      %41 = vsyncadd [#allocation6], 0
      %s43 = sshll.u32 %s3, 4
      %s44 = int_to_ptr.hbm [resolvable:$true] %s43
      %s45 = sshll.u32 [#allocation5], 4
      %s46 = int_to_ptr.vmem [resolvable:$true] %s45
      %48 = dma.hbm_to_vmem [thread:$0]  %s44, 16, %s46, [#allocation6]
    $region17: #{tpu_custom_call.1} parent=1 // pred_fallthru
      _
    // Predicated region
    $region18: #{tpu_custom_call.1} parent=1 // pred_check
      _
    $region19: #{tpu_custom_call.1} parent=1 // pred_check_branch
      %50 = sbr.rel (0) target = $region21
    $region20: #{tpu_custom_call.1} parent=1 // pred_region
      %52 = vsyncadd [#allocation6], 0
      %s53 = sshll.u32 %s4, 4
      %s54 = int_to_ptr.hbm [resolvable:$true] %s53
      %s55 = sshll.u32 [#allocation7], 4
      %s56 = int_to_ptr.vmem [resolvable:$true] %s55
      %61 = dma.hbm_to_vmem [thread:$0]  %s54, 512, %s56, [#allocation6], 128, 128, 8
    $region21: #{tpu_custom_call.1} parent=1 // pred_fallthru
      _
    // Predicated region
    $region22: #{tpu_custom_call.1} parent=1 // pred_check
      _
    $region23: #{tpu_custom_call.1} parent=1 // pred_check_branch
      %63 = sbr.rel (0) target = $region25
    $region24: #{tpu_custom_call.1} parent=1 // pred_region
      %65 = vsyncadd [#allocation9], 0
      %s66 = sshll.u32 %s5, 4
      %s67 = int_to_ptr.hbm [resolvable:$true] %s66
      %s68 = sshll.u32 [#allocation8], 4
      %s69 = int_to_ptr.vmem [resolvable:$true] %s68
      %74 = dma.hbm_to_vmem [thread:$0]  %s67, 512, %s69, [#allocation9], 128, 128, 8
    $region25: #{tpu_custom_call.1} parent=1 // pred_fallthru
      _
    // Predicated region
    $region26: #{tpu_custom_call.1} parent=1 // pred_check
      _
    $region27: #{tpu_custom_call.1} parent=1 // pred_check_branch
      %76 = sbr.rel (0) target = $region29
    $region28: #{tpu_custom_call.1} parent=1 // pred_region
      %78 = vsyncadd [#allocation9], 0
      %s80 = sshll.u32 %s6, 4
      %s81 = int_to_ptr.hbm [resolvable:$true] %s80
      %s82 = sshll.u32 [#allocation10], 4
      %s83 = int_to_ptr.vmem [resolvable:$true] %s82
      %85 = dma.hbm_to_vmem [thread:$0]  %s81, 16, %s83, [#allocation9]
    $region29: #{tpu_custom_call.1} parent=1 // pred_fallthru
      _
    // Predicated region
    $region30: #{tpu_custom_call.1} parent=1 // pred_check
      _
    $region31: #{tpu_custom_call.1} parent=1 // pred_check_branch
      %87 = sbr.rel (0) target = $region33
    $region32: #{tpu_custom_call.1} parent=1 // pred_region
      %89 = vsyncadd [#allocation12], 0
      %s90 = sshll.u32 %s7, 4
      %s91 = int_to_ptr.hbm [resolvable:$true] %s90
      %s92 = sshll.u32 [#allocation11], 4
      %s93 = int_to_ptr.vmem [resolvable:$true] %s92
      %98 = dma.hbm_to_vmem [thread:$0]  %s91, 512, %s93, [#allocation12], 128, 128, 8
    $region33: #{tpu_custom_call.1} parent=1 // pred_fallthru
      _
    // Predicated region
    $region34: #{tpu_custom_call.1} parent=1 // pred_check
      _
    $region35: #{tpu_custom_call.1} parent=1 // pred_check_branch
      %100 = sbr.rel (0) target = $region37
    $region36: #{tpu_custom_call.1} parent=1 // pred_region
      %102 = vsyncadd [#allocation12], 0
      %s104 = sshll.u32 %s8, 4
      %s105 = int_to_ptr.hbm [resolvable:$true] %s104
      %s106 = sshll.u32 [#allocation13], 4
      %s107 = int_to_ptr.vmem [resolvable:$true] %s106
      %109 = dma.hbm_to_vmem [thread:$0]  %s105, 16, %s107, [#allocation12]
    $region37: #{tpu_custom_call.1} parent=1 // pred_fallthru
      _
    // Predicated region
    $region38: #{tpu_custom_call.1} parent=1 // pred_check
      _
    $region39: #{tpu_custom_call.1} parent=1 // pred_check_branch
      %111 = sbr.rel (0) target = $region41
    $region40: #{tpu_custom_call.1} parent=1 // pred_region
      _
    $region41: #{tpu_custom_call.1} parent=1 // pred_fallthru
      _
    // Predicated region
    $region42: #{tpu_custom_call.1} parent=1 // pred_check
      _
    $region43: #{tpu_custom_call.1} parent=1 // pred_check_branch
      %113 = sbr.rel (0) target = $region45
    $region44: #{tpu_custom_call.1} parent=1 // pred_region
      _
    $region45: #{tpu_custom_call.1} parent=1 // pred_fallthru
      _
    // Predicated region
    $region46: #{tpu_custom_call.1} parent=1 // pred_check
      _
    $region47: #{tpu_custom_call.1} parent=1 // pred_check_branch
      %115 = sbr.rel (0) target = $region49
    $region48: #{tpu_custom_call.1} parent=1 // pred_region
      %117 = dma.done [#allocation3], 256
    $region49: #{tpu_custom_call.1} parent=1 // pred_fallthru
      _
    // Predicated region
    $region50: #{tpu_custom_call.1} parent=1 // pred_check
      _
    $region51: #{tpu_custom_call.1} parent=1 // pred_check_branch
      %119 = sbr.rel (0) target = $region53
    $region52: #{tpu_custom_call.1} parent=1 // pred_region
      %121 = dma.done [#allocation6], 16
    $region53: #{tpu_custom_call.1} parent=1 // pred_fallthru
      _
    // Predicated region
    $region54: #{tpu_custom_call.1} parent=1 // pred_check
      _
    $region55: #{tpu_custom_call.1} parent=1 // pred_check_branch
      %123 = sbr.rel (0) target = $region57
    $region56: #{tpu_custom_call.1} parent=1 // pred_region
      %125 = dma.done [#allocation6], 512
    $region57: #{tpu_custom_call.1} parent=1 // pred_fallthru
      _
    // Predicated region
    $region58: #{tpu_custom_call.1} parent=1 // pred_check
      _
    $region59: #{tpu_custom_call.1} parent=1 // pred_check_branch
      %127 = sbr.rel (0) target = $region61
    $region60: #{tpu_custom_call.1} parent=1 // pred_region
      %129 = dma.done [#allocation9], 512
    $region61: #{tpu_custom_call.1} parent=1 // pred_fallthru
      _
    // Predicated region
    $region62: #{tpu_custom_call.1} parent=1 // pred_check
      _
    $region63: #{tpu_custom_call.1} parent=1 // pred_check_branch
      %131 = sbr.rel (0) target = $region65
    $region64: #{tpu_custom_call.1} parent=1 // pred_region
      %133 = dma.done [#allocation9], 16
    $region65: #{tpu_custom_call.1} parent=1 // pred_fallthru
      _
    // Predicated region
    $region66: #{tpu_custom_call.1} parent=1 // pred_check
      _
    $region67: #{tpu_custom_call.1} parent=1 // pred_check_branch
      %135 = sbr.rel (0) target = $region69
    $region68: #{tpu_custom_call.1} parent=1 // pred_region
      %137 = dma.done [#allocation12], 512
    $region69: #{tpu_custom_call.1} parent=1 // pred_fallthru
      _
    // Predicated region
    $region70: #{tpu_custom_call.1} parent=1 // pred_check
      _
    $region71: #{tpu_custom_call.1} parent=1 // pred_check_branch
      %139 = sbr.rel (0) target = $region73
    $region72: #{tpu_custom_call.1} parent=1 // pred_region
      %141 = dma.done [#allocation12], 16
    $region73: #{tpu_custom_call.1} parent=1 // pred_fallthru
      _
    %v142 = vld [vmem:[%s2] sm:$0xff]
    %v143 = vld [vmem:[%s2 + $0x8] sm:$0xff]
    %v144 = vld [vmem:[%s2 + $0x10] sm:$0xff]
    %v145 = vld [vmem:[%s2 + $0x18] sm:$0xff]
    %v146 = vld [vmem:[#allocation7] sm:$0xff]
    %v147 = vld [vmem:[#allocation7 + $0x8] sm:$0xff]
    %v148 = vld [vmem:[#allocation7 + $0x10] sm:$0xff]
    %v149 = vld [vmem:[#allocation7 + $0x18] sm:$0xff]
    %v150 = vld [vmem:[#allocation8] sm:$0xff]
    %v151 = vld [vmem:[#allocation8 + $0x8] sm:$0xff]
    %v152 = vld [vmem:[#allocation8 + $0x10] sm:$0xff]
    %v153 = vld [vmem:[#allocation8 + $0x18] sm:$0xff]
    %v154 = vld [vmem:[#allocation10] sm:$0x1]
    %v155 = vld [vmem:[%s0] sm:$0xff]
    %v156 = vld [vmem:[#allocation2] sm:$0xff]
    %v157 = vld [vmem:[#allocation2 + $0x8] sm:$0xff]
    %v158 = vld [vmem:[#allocation5] sm:$0x1]
    %v160 = vperm.slane %v158, 0
    %vm162 = vcmask 130048
    %v164 = vsel %vm162, %v155, 0
    %166 = vmatpush.msra.mxu0 0.0
    %167 = vmatpush.msra.mxu0 0.0
    %168 = vmatpush.msra.mxu0 0.0
    %169 = vmatpush.msra.mxu0 0.0
    %170 = vmatpush.msra.mxu0 0.0
    %171 = vmatpush.msra.mxu0 0.0
    %172 = vmatpush.msra.mxu0 0.0
    %173 = vmatpush.msra.mxu0 0.0
    %174 = vmatpush.msra.mxu0 0.0
    %175 = vmatpush.msra.mxu0 0.0
    %176 = vmatpush.msra.mxu0 0.0
    %177 = vmatpush.msra.mxu0 0.0
    %178 = vmatpush.msra.mxu0 0.0
    %179 = vmatpush.msra.mxu0 0.0
    %180 = vmatpush.msra.mxu0 %v157
    %181 = vmatpush.msra.mxu0 %v156
    %182 = vmatmul.f32.gmra.mxu0 %v164
    %v183 = vpop.f32.mrf.mxu0
    %v184 = vadd.f32 %v160, %v183
    %185 = vdwg.mxu0
    %vm186 = vcmask 261120
    %v188 = vsel %vm186, 0.0, 0
    %190 = vmatpush.msra.mxu0 0.0
    %191 = vmatpush.msra.mxu0 0.0
    %192 = vmatpush.msra.mxu0 0.0
    %193 = vmatpush.msra.mxu0 0.0
    %194 = vmatpush.msra.mxu0 0.0
    %195 = vmatpush.msra.mxu0 0.0
    %196 = vmatpush.msra.mxu0 0.0
    %197 = vmatpush.msra.mxu0 0.0
    %198 = vmatpush.msra.mxu0 0.0
    %199 = vmatpush.msra.mxu0 0.0
    %200 = vmatpush.msra.mxu0 0.0
    %201 = vmatpush.msra.mxu0 0.0
    %202 = vmatpush.msra.mxu0 %v145
    %203 = vmatpush.msra.mxu0 %v144
    %204 = vmatpush.msra.mxu0 %v143
    %205 = vmatpush.msra.mxu0 %v142
    %206 = vmatmul.f32.gmra.mxu0 %v188
    %v207 = vpop.f32.mrf.mxu0
    %v208 = vadd.f32 0.0, %v207
    %209 = vdwg.mxu0
    %v210 = vadd.f32 %v184, %v208
    %v211 = vxor.u32 %v210, 2147483648
    %v212 = vmul.f32 %v211, 1.442695
    %v213 = vpow.pop %v212
    %v214 = vadd.f32 %v213, 1.0
    %v215 = vrcp.pop %v214
    %v216 = vmul.f32 %v214, %v215
    %v217 = vsub.f32 1.0, %v216
    %v218 = vmul.f32 %v215, %v217
    %v219 = vadd.f32 %v215, %v218
    %vm220 = vweird.f32 %v214
    %vm221 = vweird.f32 %v215
    %vm222 = vmor %vm220, %vm221
    %v223 = vsel %vm222, %v215, %v219
    %v224 = vand.u32 2147483647, %v214
    %vm225 = vcmp.eq.f32.partialorder %v224, 8.507059e+37
    %v226 = vand.u32 %v214, 2147483648
    %v227 = vor.u32 1.1754944e-38, %v226
    %v228 = vsel %vm225, %v227, %v223
    %v229 = vmul.f32 1.0, %v228
    %v230 = vmul.f32 %v229, 2.0
    %v231 = vsub.f32 %v230, 1.0
    %v232 = vmul.f32 %v229, 0.0
    %234 = vrot.lane.b32.xlu0 %v231, 64
    %v235 = vpop.permute.xlu0 %234
    %v237 = vmul.f32 %v229, %v235
    %239 = vrot.lane.b32.xlu0 %v237, 32
    %v240 = vpop.permute.xlu0 %239
    %v242 = vadd.f32 %v232, %v240
    %v243 = vtanh.pop %v242
    %245 = vrot.lane.b32.xlu0 %v243, 64
    %v246 = vpop.permute.xlu0 %245
    %v248 = vmul.f32 %v229, %v246
    %250 = vrot.lane.b32.xlu0 %v248, 32
    %v251 = vpop.permute.xlu0 %250
    %v252 = vsel %vm186, %v251, 0
    %254 = vmatpush.msra.mxu0 0.0
    %255 = vmatpush.msra.mxu0 0.0
    %256 = vmatpush.msra.mxu0 0.0
    %257 = vmatpush.msra.mxu0 0.0
    %258 = vmatpush.msra.mxu0 0.0
    %259 = vmatpush.msra.mxu0 0.0
    %260 = vmatpush.msra.mxu0 0.0
    %261 = vmatpush.msra.mxu0 0.0
    %262 = vmatpush.msra.mxu0 0.0
    %263 = vmatpush.msra.mxu0 0.0
    %264 = vmatpush.msra.mxu0 0.0
    %265 = vmatpush.msra.mxu0 0.0
    %266 = vmatpush.msra.mxu0 %v149
    %267 = vmatpush.msra.mxu0 %v148
    %268 = vmatpush.msra.mxu0 %v147
    %269 = vmatpush.msra.mxu0 %v146
    %270 = vmatmul.f32.gmra.mxu0 %v252
    %v271 = vpop.f32.mrf.mxu0
    %v272 = vadd.f32 %v154, %v271
    %273 = vdwg.mxu0
    %v274 = vxor.u32 %v272, 2147483648
    %v275 = vmul.f32 %v274, 1.442695
    %v276 = vpow.pop %v275
    %v277 = vadd.f32 %v276, 1.0
    %v278 = vrcp.pop %v277
    %v279 = vmul.f32 %v277, %v278
    %v280 = vsub.f32 1.0, %v279
    %v281 = vmul.f32 %v278, %v280
    %v282 = vadd.f32 %v278, %v281
    %vm283 = vweird.f32 %v277
    %vm284 = vweird.f32 %v278
    %vm285 = vmor %vm283, %vm284
    %v286 = vsel %vm285, %v278, %v282
    %v287 = vand.u32 2147483647, %v277
    %vm288 = vcmp.eq.f32.partialorder %v287, 8.507059e+37
    %v289 = vand.u32 %v277, 2147483648
    %v290 = vor.u32 1.1754944e-38, %v289
    %v291 = vsel %vm288, %v290, %v286
    %v292 = vmul.f32 1.0, %v291
    %v293 = vmul.f32 %v292, 2.0
    %v294 = vsub.f32 %v293, 1.0
    %v295 = vmul.f32 %v292, 0.0
    %297 = vrot.lane.b32.xlu0 %v294, 64
    %v298 = vpop.permute.xlu0 %297
    %v300 = vmul.f32 %v292, %v298
    %302 = vrot.lane.b32.xlu0 %v300, 32
    %v303 = vpop.permute.xlu0 %302
    %v305 = vadd.f32 %v295, %v303
    %v306 = vtanh.pop %v305
    %308 = vrot.lane.b32.xlu0 %v306, 64
    %v309 = vpop.permute.xlu0 %308
    %v311 = vmul.f32 %v292, %v309
    %313 = vrot.lane.b32.xlu0 %v311, 32
    %v314 = vpop.permute.xlu0 %313
    %v315 = vsel %vm186, %v314, 0
    %317 = vmatpush.msra.mxu0 0.0
    %318 = vmatpush.msra.mxu0 0.0
    %319 = vmatpush.msra.mxu0 0.0
    %320 = vmatpush.msra.mxu0 0.0
    %321 = vmatpush.msra.mxu0 0.0
    %322 = vmatpush.msra.mxu0 0.0
    %323 = vmatpush.msra.mxu0 0.0
    %324 = vmatpush.msra.mxu0 0.0
    %325 = vmatpush.msra.mxu0 0.0
    %326 = vmatpush.msra.mxu0 0.0
    %327 = vmatpush.msra.mxu0 0.0
    %328 = vmatpush.msra.mxu0 0.0
    %329 = vmatpush.msra.mxu0 %v153
    %330 = vmatpush.msra.mxu0 %v152
    %331 = vmatpush.msra.mxu0 %v151
    %332 = vmatpush.msra.mxu0 %v150
    %333 = vmatmul.f32.gmra.mxu0 %v315
    %v334 = vpop.f32.mrf.mxu0
    %v335 = vadd.f32 %v154, %v334
    %336 = vdwg.mxu0
    %337 = vmatpush.msra.mxu0 0.0
    %338 = vmatpush.msra.mxu0 0.0
    %339 = vmatpush.msra.mxu0 0.0
    %340 = vmatpush.msra.mxu0 0.0
    %341 = vmatpush.msra.mxu0 0.0
    %342 = vmatpush.msra.mxu0 0.0
    %343 = vmatpush.msra.mxu0 0.0
    %344 = vmatpush.msra.mxu0 0.0
    %345 = vmatpush.msra.mxu0 0.0
    %346 = vmatpush.msra.mxu0 0.0
    %347 = vmatpush.msra.mxu0 0.0
    %348 = vmatpush.msra.mxu0 0.0
    %349 = vmatpush.msra.mxu0 %v145
    %350 = vmatpush.msra.mxu0 %v144
    %351 = vmatpush.msra.mxu0 %v143
    %352 = vmatpush.msra.mxu0 %v142
    %353 = vmatmul.f32.gmra.mxu0 %v252
    %v354 = vpop.f32.mrf.mxu0
    %v355 = vadd.f32 0.0, %v354
    %356 = vdwg.mxu0
    %v358 = vrot.slane %v355, 7
    %v360 = vadd.f32 %v184, %v358
    %v361 = vxor.u32 %v360, 2147483648
    %v362 = vmul.f32 %v361, 1.442695
    %v363 = vpow.pop %v362
    %v364 = vadd.f32 %v363, 1.0
    %v365 = vrcp.pop %v364
    %v366 = vmul.f32 %v364, %v365
    %v367 = vsub.f32 1.0, %v366
    %v368 = vmul.f32 %v365, %v367
    %v369 = vadd.f32 %v365, %v368
    %vm370 = vweird.f32 %v364
    %vm371 = vweird.f32 %v365
    %vm372 = vmor %vm370, %vm371
    %v373 = vsel %vm372, %v365, %v369
    %v374 = vand.u32 2147483647, %v364
    %vm375 = vcmp.eq.f32.partialorder %v374, 8.507059e+37
    %v376 = vand.u32 %v364, 2147483648
    %v377 = vor.u32 1.1754944e-38, %v376
    %v378 = vsel %vm375, %v377, %v373
    %v379 = vmul.f32 1.0, %v378
    %v380 = vmul.f32 %v379, 2.0
    %v381 = vsub.f32 %v380, 1.0
    %v383 = vrot.slane %v242, 7
    %v385 = vmul.f32 %v379, %v383
    %387 = vrot.lane.b32.xlu0 %v381, 64
    %v388 = vpop.permute.xlu0 %387
    %v390 = vmul.f32 %v379, %v388
    %392 = vrot.lane.b32.xlu0 %v390, 32
    %v393 = vpop.permute.xlu0 %392
    %v395 = vadd.f32 %v385, %v393
    %v396 = vtanh.pop %v395
    %398 = vrot.lane.b32.xlu0 %v396, 64
    %v399 = vpop.permute.xlu0 %398
    %v401 = vmul.f32 %v379, %v399
    %v403 = vrot.slane %v401, 1
    %404 = vrot.lane.b32.xlu0 %v403, 32
    %v405 = vpop.permute.xlu0 %404
    %v406 = vsel %vm186, %v405, 0
    %408 = vmatpush.msra.mxu0 0.0
    %409 = vmatpush.msra.mxu0 0.0
    %410 = vmatpush.msra.mxu0 0.0
    %411 = vmatpush.msra.mxu0 0.0
    %412 = vmatpush.msra.mxu0 0.0
    %413 = vmatpush.msra.mxu0 0.0
    %414 = vmatpush.msra.mxu0 0.0
    %415 = vmatpush.msra.mxu0 0.0
    %416 = vmatpush.msra.mxu0 0.0
    %417 = vmatpush.msra.mxu0 0.0
    %418 = vmatpush.msra.mxu0 0.0
    %419 = vmatpush.msra.mxu0 0.0
    %420 = vmatpush.msra.mxu0 %v149
    %421 = vmatpush.msra.mxu0 %v148
    %422 = vmatpush.msra.mxu0 %v147
    %423 = vmatpush.msra.mxu0 %v146
    %424 = vmatmul.f32.gmra.mxu0 %v406
    %v425 = vpop.f32.mrf.mxu0
    %v426 = vadd.f32 %v335, %v425
    %427 = vdwg.mxu0
    %v428 = vxor.u32 %v426, 2147483648
    %v429 = vmul.f32 %v428, 1.442695
    %v430 = vpow.pop %v429
    %v431 = vadd.f32 %v430, 1.0
    %v432 = vrcp.pop %v431
    %v433 = vmul.f32 %v431, %v432
    %v434 = vsub.f32 1.0, %v433
    %v435 = vmul.f32 %v432, %v434
    %v436 = vadd.f32 %v432, %v435
    %vm437 = vweird.f32 %v431
    %vm438 = vweird.f32 %v432
    %vm439 = vmor %vm437, %vm438
    %v440 = vsel %vm439, %v432, %v436
    %v441 = vand.u32 2147483647, %v431
    %vm442 = vcmp.eq.f32.partialorder %v441, 8.507059e+37
    %v443 = vand.u32 %v431, 2147483648
    %v444 = vor.u32 1.1754944e-38, %v443
    %v445 = vsel %vm442, %v444, %v440
    %v446 = vmul.f32 1.0, %v445
    %v447 = vmul.f32 %v446, 2.0
    %v448 = vsub.f32 %v447, 1.0
    %v449 = vmul.f32 %v446, %v305
    %451 = vrot.lane.b32.xlu0 %v448, 64
    %v452 = vpop.permute.xlu0 %451
    %v454 = vmul.f32 %v446, %v452
    %456 = vrot.lane.b32.xlu0 %v454, 32
    %v457 = vpop.permute.xlu0 %456
    %v459 = vadd.f32 %v449, %v457
    %v460 = vtanh.pop %v459
    %462 = vrot.lane.b32.xlu0 %v460, 64
    %v463 = vpop.permute.xlu0 %462
    %v465 = vmul.f32 %v446, %v463
    %467 = vrot.lane.b32.xlu0 %v465, 32
    %v468 = vpop.permute.xlu0 %467
    %v469 = vsel %vm186, %v468, 0
    %471 = vmatpush.msra.mxu0 0.0
    %472 = vmatpush.msra.mxu0 0.0
    %473 = vmatpush.msra.mxu0 0.0
    %474 = vmatpush.msra.mxu0 0.0
    %475 = vmatpush.msra.mxu0 0.0
    %476 = vmatpush.msra.mxu0 0.0
    %477 = vmatpush.msra.mxu0 0.0
    %478 = vmatpush.msra.mxu0 0.0
    %479 = vmatpush.msra.mxu0 0.0
    %480 = vmatpush.msra.mxu0 0.0
    %481 = vmatpush.msra.mxu0 0.0
    %482 = vmatpush.msra.mxu0 0.0
    %483 = vmatpush.msra.mxu0 %v153
    %484 = vmatpush.msra.mxu0 %v152
    %485 = vmatpush.msra.mxu0 %v151
    %486 = vmatpush.msra.mxu0 %v150
    %487 = vmatmul.f32.gmra.mxu0 %v469
    %v488 = vpop.f32.mrf.mxu0
    %v489 = vadd.f32 %v154, %v488
    %490 = vdwg.mxu0
    %491 = vmatpush.msra.mxu0 0.0
    %492 = vmatpush.msra.mxu0 0.0
    %493 = vmatpush.msra.mxu0 0.0
    %494 = vmatpush.msra.mxu0 0.0
    %495 = vmatpush.msra.mxu0 0.0
    %496 = vmatpush.msra.mxu0 0.0
    %497 = vmatpush.msra.mxu0 0.0
    %498 = vmatpush.msra.mxu0 0.0
    %499 = vmatpush.msra.mxu0 0.0
    %500 = vmatpush.msra.mxu0 0.0
    %501 = vmatpush.msra.mxu0 0.0
    %502 = vmatpush.msra.mxu0 0.0
    %503 = vmatpush.msra.mxu0 %v145
    %504 = vmatpush.msra.mxu0 %v144
    %505 = vmatpush.msra.mxu0 %v143
    %506 = vmatpush.msra.mxu0 %v142
    %507 = vmatmul.f32.gmra.mxu0 %v406
    %v508 = vpop.f32.mrf.mxu0
    %v509 = vadd.f32 0.0, %v508
    %510 = vdwg.mxu0
    %v512 = vrot.slane %v509, 6
    %v514 = vadd.f32 %v184, %v512
    %v515 = vxor.u32 %v514, 2147483648
    %v516 = vmul.f32 %v515, 1.442695
    %v517 = vpow.pop %v516
    %v518 = vadd.f32 %v517, 1.0
    %v519 = vrcp.pop %v518
    %v520 = vmul.f32 %v518, %v519
    %v521 = vsub.f32 1.0, %v520
    %v522 = vmul.f32 %v519, %v521
    %v523 = vadd.f32 %v519, %v522
    %vm524 = vweird.f32 %v518
    %vm525 = vweird.f32 %v519
    %vm526 = vmor %vm524, %vm525
    %v527 = vsel %vm526, %v519, %v523
    %v528 = vand.u32 2147483647, %v518
    %vm529 = vcmp.eq.f32.partialorder %v528, 8.507059e+37
    %v530 = vand.u32 %v518, 2147483648
    %v531 = vor.u32 1.1754944e-38, %v530
    %v532 = vsel %vm529, %v531, %v527
    %v533 = vmul.f32 1.0, %v532
    %v534 = vmul.f32 %v533, 2.0
    %v535 = vsub.f32 %v534, 1.0
    %v537 = vrot.slane %v395, 7
    %v539 = vmul.f32 %v533, %v537
    %541 = vrot.lane.b32.xlu0 %v535, 64
    %v542 = vpop.permute.xlu0 %541
    %v544 = vmul.f32 %v533, %v542
    %546 = vrot.lane.b32.xlu0 %v544, 32
    %v547 = vpop.permute.xlu0 %546
    %v549 = vadd.f32 %v539, %v547
    %v550 = vtanh.pop %v549
    %552 = vrot.lane.b32.xlu0 %v550, 64
    %v553 = vpop.permute.xlu0 %552
    %v555 = vmul.f32 %v533, %v553
    %v557 = vrot.slane %v555, 2
    %558 = vrot.lane.b32.xlu0 %v557, 32
    %v559 = vpop.permute.xlu0 %558
    %v560 = vsel %vm186, %v559, 0
    %562 = vmatpush.msra.mxu0 0.0
    %563 = vmatpush.msra.mxu0 0.0
    %564 = vmatpush.msra.mxu0 0.0
    %565 = vmatpush.msra.mxu0 0.0
    %566 = vmatpush.msra.mxu0 0.0
    %567 = vmatpush.msra.mxu0 0.0
    %568 = vmatpush.msra.mxu0 0.0
    %569 = vmatpush.msra.mxu0 0.0
    %570 = vmatpush.msra.mxu0 0.0
    %571 = vmatpush.msra.mxu0 0.0
    %572 = vmatpush.msra.mxu0 0.0
    %573 = vmatpush.msra.mxu0 0.0
    %574 = vmatpush.msra.mxu0 %v149
    %575 = vmatpush.msra.mxu0 %v148
    %576 = vmatpush.msra.mxu0 %v147
    %577 = vmatpush.msra.mxu0 %v146
    %578 = vmatmul.f32.gmra.mxu0 %v560
    %v579 = vpop.f32.mrf.mxu0
    %v580 = vadd.f32 %v489, %v579
    %581 = vdwg.mxu0
    %v582 = vxor.u32 %v580, 2147483648
    %v583 = vmul.f32 %v582, 1.442695
    %v584 = vpow.pop %v583
    %v585 = vadd.f32 %v584, 1.0
    %v586 = vrcp.pop %v585
    %v587 = vmul.f32 %v585, %v586
    %v588 = vsub.f32 1.0, %v587
    %v589 = vmul.f32 %v586, %v588
    %v590 = vadd.f32 %v586, %v589
    %vm591 = vweird.f32 %v585
    %vm592 = vweird.f32 %v586
    %vm593 = vmor %vm591, %vm592
    %v594 = vsel %vm593, %v586, %v590
    %v595 = vand.u32 2147483647, %v585
    %vm596 = vcmp.eq.f32.partialorder %v595, 8.507059e+37
    %v597 = vand.u32 %v585, 2147483648
    %v598 = vor.u32 1.1754944e-38, %v597
    %v599 = vsel %vm596, %v598, %v594
    %v600 = vmul.f32 1.0, %v599
    %v601 = vmul.f32 %v600, 2.0
    %v602 = vsub.f32 %v601, 1.0
    %v603 = vmul.f32 %v600, %v459
    %605 = vrot.lane.b32.xlu0 %v602, 64
    %v606 = vpop.permute.xlu0 %605
    %v608 = vmul.f32 %v600, %v606
    %610 = vrot.lane.b32.xlu0 %v608, 32
    %v611 = vpop.permute.xlu0 %610
    %v613 = vadd.f32 %v603, %v611
    %v614 = vtanh.pop %v613
    %616 = vrot.lane.b32.xlu0 %v614, 64
    %v617 = vpop.permute.xlu0 %616
    %v619 = vmul.f32 %v600, %v617
    %621 = vrot.lane.b32.xlu0 %v619, 32
    %v622 = vpop.permute.xlu0 %621
    %v623 = vsel %vm186, %v622, 0
    %625 = vmatpush.msra.mxu0 0.0
    %626 = vmatpush.msra.mxu0 0.0
    %627 = vmatpush.msra.mxu0 0.0
    %628 = vmatpush.msra.mxu0 0.0
    %629 = vmatpush.msra.mxu0 0.0
    %630 = vmatpush.msra.mxu0 0.0
    %631 = vmatpush.msra.mxu0 0.0
    %632 = vmatpush.msra.mxu0 0.0
    %633 = vmatpush.msra.mxu0 0.0
    %634 = vmatpush.msra.mxu0 0.0
    %635 = vmatpush.msra.mxu0 0.0
    %636 = vmatpush.msra.mxu0 0.0
    %637 = vmatpush.msra.mxu0 %v153
    %638 = vmatpush.msra.mxu0 %v152
    %639 = vmatpush.msra.mxu0 %v151
    %640 = vmatpush.msra.mxu0 %v150
    %641 = vmatmul.f32.gmra.mxu0 %v623
    %v642 = vpop.f32.mrf.mxu0
    %v643 = vadd.f32 %v154, %v642
    %644 = vdwg.mxu0
    %645 = vmatpush.msra.mxu0 0.0
    %646 = vmatpush.msra.mxu0 0.0
    %647 = vmatpush.msra.mxu0 0.0
    %648 = vmatpush.msra.mxu0 0.0
    %649 = vmatpush.msra.mxu0 0.0
    %650 = vmatpush.msra.mxu0 0.0
    %651 = vmatpush.msra.mxu0 0.0
    %652 = vmatpush.msra.mxu0 0.0
    %653 = vmatpush.msra.mxu0 0.0
    %654 = vmatpush.msra.mxu0 0.0
    %655 = vmatpush.msra.mxu0 0.0
    %656 = vmatpush.msra.mxu0 0.0
    %657 = vmatpush.msra.mxu0 %v145
    %658 = vmatpush.msra.mxu0 %v144
    %659 = vmatpush.msra.mxu0 %v143
    %660 = vmatpush.msra.mxu0 %v142
    %661 = vmatmul.f32.gmra.mxu0 %v560
    %v662 = vpop.f32.mrf.mxu0
    %v663 = vadd.f32 0.0, %v662
    %664 = vdwg.mxu0
    %v666 = vrot.slane %v663, 5
    %v668 = vadd.f32 %v184, %v666
    %v669 = vxor.u32 %v668, 2147483648
    %v670 = vmul.f32 %v669, 1.442695
    %v671 = vpow.pop %v670
    %v672 = vadd.f32 %v671, 1.0
    %v673 = vrcp.pop %v672
    %v674 = vmul.f32 %v672, %v673
    %v675 = vsub.f32 1.0, %v674
    %v676 = vmul.f32 %v673, %v675
    %v677 = vadd.f32 %v673, %v676
    %vm678 = vweird.f32 %v672
    %vm679 = vweird.f32 %v673
    %vm680 = vmor %vm678, %vm679
    %v681 = vsel %vm680, %v673, %v677
    %v682 = vand.u32 2147483647, %v672
    %vm683 = vcmp.eq.f32.partialorder %v682, 8.507059e+37
    %v684 = vand.u32 %v672, 2147483648
    %v685 = vor.u32 1.1754944e-38, %v684
    %v686 = vsel %vm683, %v685, %v681
    %v687 = vmul.f32 1.0, %v686
    %v688 = vmul.f32 %v687, 2.0
    %v689 = vsub.f32 %v688, 1.0
    %v691 = vrot.slane %v549, 7
    %v693 = vmul.f32 %v687, %v691
    %695 = vrot.lane.b32.xlu0 %v689, 64
    %v696 = vpop.permute.xlu0 %695
    %v698 = vmul.f32 %v687, %v696
    %700 = vrot.lane.b32.xlu0 %v698, 32
    %v701 = vpop.permute.xlu0 %700
    %v703 = vadd.f32 %v693, %v701
    %v704 = vtanh.pop %v703
    %706 = vrot.lane.b32.xlu0 %v704, 64
    %v707 = vpop.permute.xlu0 %706
    %v709 = vmul.f32 %v687, %v707
    %v711 = vrot.slane %v709, 3
    %712 = vrot.lane.b32.xlu0 %v711, 32
    %v713 = vpop.permute.xlu0 %712
    %v714 = vsel %vm186, %v713, 0
    %716 = vmatpush.msra.mxu0 0.0
    %717 = vmatpush.msra.mxu0 0.0
    %718 = vmatpush.msra.mxu0 0.0
    %719 = vmatpush.msra.mxu0 0.0
    %720 = vmatpush.msra.mxu0 0.0
    %721 = vmatpush.msra.mxu0 0.0
    %722 = vmatpush.msra.mxu0 0.0
    %723 = vmatpush.msra.mxu0 0.0
    %724 = vmatpush.msra.mxu0 0.0
    %725 = vmatpush.msra.mxu0 0.0
    %726 = vmatpush.msra.mxu0 0.0
    %727 = vmatpush.msra.mxu0 0.0
    %728 = vmatpush.msra.mxu0 %v149
    %729 = vmatpush.msra.mxu0 %v148
    %730 = vmatpush.msra.mxu0 %v147
    %731 = vmatpush.msra.mxu0 %v146
    %732 = vmatmul.f32.gmra.mxu0 %v714
    %v733 = vpop.f32.mrf.mxu0
    %v734 = vadd.f32 %v643, %v733
    %735 = vdwg.mxu0
    %v736 = vxor.u32 %v734, 2147483648
    %v737 = vmul.f32 %v736, 1.442695
    %v738 = vpow.pop %v737
    %v739 = vadd.f32 %v738, 1.0
    %v740 = vrcp.pop %v739
    %v741 = vmul.f32 %v739, %v740
    %v742 = vsub.f32 1.0, %v741
    %v743 = vmul.f32 %v740, %v742
    %v744 = vadd.f32 %v740, %v743
    %vm745 = vweird.f32 %v739
    %vm746 = vweird.f32 %v740
    %vm747 = vmor %vm745, %vm746
    %v748 = vsel %vm747, %v740, %v744
    %v749 = vand.u32 2147483647, %v739
    %vm750 = vcmp.eq.f32.partialorder %v749, 8.507059e+37
    %v751 = vand.u32 %v739, 2147483648
    %v752 = vor.u32 1.1754944e-38, %v751
    %v753 = vsel %vm750, %v752, %v748
    %v754 = vmul.f32 1.0, %v753
    %v755 = vmul.f32 %v754, 2.0
    %v756 = vsub.f32 %v755, 1.0
    %v757 = vmul.f32 %v754, %v613
    %759 = vrot.lane.b32.xlu0 %v756, 64
    %v760 = vpop.permute.xlu0 %759
    %v762 = vmul.f32 %v754, %v760
    %764 = vrot.lane.b32.xlu0 %v762, 32
    %v765 = vpop.permute.xlu0 %764
    %v767 = vadd.f32 %v757, %v765
    %v768 = vtanh.pop %v767
    %770 = vrot.lane.b32.xlu0 %v768, 64
    %v771 = vpop.permute.xlu0 %770
    %v773 = vmul.f32 %v754, %v771
    %775 = vrot.lane.b32.xlu0 %v773, 32
    %v776 = vpop.permute.xlu0 %775
    %v777 = vsel %vm186, %v776, 0
    %779 = vmatpush.msra.mxu0 0.0
    %780 = vmatpush.msra.mxu0 0.0
    %781 = vmatpush.msra.mxu0 0.0
    %782 = vmatpush.msra.mxu0 0.0
    %783 = vmatpush.msra.mxu0 0.0
    %784 = vmatpush.msra.mxu0 0.0
    %785 = vmatpush.msra.mxu0 0.0
    %786 = vmatpush.msra.mxu0 0.0
    %787 = vmatpush.msra.mxu0 0.0
    %788 = vmatpush.msra.mxu0 0.0
    %789 = vmatpush.msra.mxu0 0.0
    %790 = vmatpush.msra.mxu0 0.0
    %791 = vmatpush.msra.mxu0 %v153
    %792 = vmatpush.msra.mxu0 %v152
    %793 = vmatpush.msra.mxu0 %v151
    %794 = vmatpush.msra.mxu0 %v150
    %795 = vmatmul.f32.gmra.mxu0 %v777
    %v796 = vpop.f32.mrf.mxu0
    %v797 = vadd.f32 %v154, %v796
    %798 = vdwg.mxu0
    %799 = vmatpush.msra.mxu0 0.0
    %800 = vmatpush.msra.mxu0 0.0
    %801 = vmatpush.msra.mxu0 0.0
    %802 = vmatpush.msra.mxu0 0.0
    %803 = vmatpush.msra.mxu0 0.0
    %804 = vmatpush.msra.mxu0 0.0
    %805 = vmatpush.msra.mxu0 0.0
    %806 = vmatpush.msra.mxu0 0.0
    %807 = vmatpush.msra.mxu0 0.0
    %808 = vmatpush.msra.mxu0 0.0
    %809 = vmatpush.msra.mxu0 0.0
    %810 = vmatpush.msra.mxu0 0.0
    %811 = vmatpush.msra.mxu0 %v145
    %812 = vmatpush.msra.mxu0 %v144
    %813 = vmatpush.msra.mxu0 %v143
    %814 = vmatpush.msra.mxu0 %v142
    %815 = vmatmul.f32.gmra.mxu0 %v714
    %v816 = vpop.f32.mrf.mxu0
    %v817 = vadd.f32 0.0, %v816
    %818 = vdwg.mxu0
    %v820 = vrot.slane %v817, 4
    %v822 = vadd.f32 %v184, %v820
    %v823 = vxor.u32 %v822, 2147483648
    %v824 = vmul.f32 %v823, 1.442695
    %v825 = vpow.pop %v824
    %v826 = vadd.f32 %v825, 1.0
    %v827 = vrcp.pop %v826
    %v828 = vmul.f32 %v826, %v827
    %v829 = vsub.f32 1.0, %v828
    %v830 = vmul.f32 %v827, %v829
    %v831 = vadd.f32 %v827, %v830
    %vm832 = vweird.f32 %v826
    %vm833 = vweird.f32 %v827
    %vm834 = vmor %vm832, %vm833
    %v835 = vsel %vm834, %v827, %v831
    %v836 = vand.u32 2147483647, %v826
    %vm837 = vcmp.eq.f32.partialorder %v836, 8.507059e+37
    %v838 = vand.u32 %v826, 2147483648
    %v839 = vor.u32 1.1754944e-38, %v838
    %v840 = vsel %vm837, %v839, %v835
    %v841 = vmul.f32 1.0, %v840
    %v842 = vmul.f32 %v841, 2.0
    %v843 = vsub.f32 %v842, 1.0
    %v845 = vrot.slane %v703, 7
    %v847 = vmul.f32 %v841, %v845
    %849 = vrot.lane.b32.xlu0 %v843, 64
    %v850 = vpop.permute.xlu0 %849
    %v852 = vmul.f32 %v841, %v850
    %854 = vrot.lane.b32.xlu0 %v852, 32
    %v855 = vpop.permute.xlu0 %854
    %v857 = vadd.f32 %v847, %v855
    %v858 = vtanh.pop %v857
    %860 = vrot.lane.b32.xlu0 %v858, 64
    %v861 = vpop.permute.xlu0 %860
    %v863 = vmul.f32 %v841, %v861
    %v865 = vrot.slane %v863, 4
    %866 = vrot.lane.b32.xlu0 %v865, 32
    %v867 = vpop.permute.xlu0 %866
    %v868 = vsel %vm186, %v867, 0
    %870 = vmatpush.msra.mxu0 0.0
    %871 = vmatpush.msra.mxu0 0.0
    %872 = vmatpush.msra.mxu0 0.0
    %873 = vmatpush.msra.mxu0 0.0
    %874 = vmatpush.msra.mxu0 0.0
    %875 = vmatpush.msra.mxu0 0.0
    %876 = vmatpush.msra.mxu0 0.0
    %877 = vmatpush.msra.mxu0 0.0
    %878 = vmatpush.msra.mxu0 0.0
    %879 = vmatpush.msra.mxu0 0.0
    %880 = vmatpush.msra.mxu0 0.0
    %881 = vmatpush.msra.mxu0 0.0
    %882 = vmatpush.msra.mxu0 %v149
    %883 = vmatpush.msra.mxu0 %v148
    %884 = vmatpush.msra.mxu0 %v147
    %885 = vmatpush.msra.mxu0 %v146
    %886 = vmatmul.f32.gmra.mxu0 %v868
    %v887 = vpop.f32.mrf.mxu0
    %v888 = vadd.f32 %v797, %v887
    %889 = vdwg.mxu0
    %v890 = vxor.u32 %v888, 2147483648
    %v891 = vmul.f32 %v890, 1.442695
    %v892 = vpow.pop %v891
    %v893 = vadd.f32 %v892, 1.0
    %v894 = vrcp.pop %v893
    %v895 = vmul.f32 %v893, %v894
    %v896 = vsub.f32 1.0, %v895
    %v897 = vmul.f32 %v894, %v896
    %v898 = vadd.f32 %v894, %v897
    %vm899 = vweird.f32 %v893
    %vm900 = vweird.f32 %v894
    %vm901 = vmor %vm899, %vm900
    %v902 = vsel %vm901, %v894, %v898
    %v903 = vand.u32 2147483647, %v893
    %vm904 = vcmp.eq.f32.partialorder %v903, 8.507059e+37
    %v905 = vand.u32 %v893, 2147483648
    %v906 = vor.u32 1.1754944e-38, %v905
    %v907 = vsel %vm904, %v906, %v902
    %v908 = vmul.f32 1.0, %v907
    %v909 = vmul.f32 %v908, 2.0
    %v910 = vsub.f32 %v909, 1.0
    %v911 = vmul.f32 %v908, %v767
    %913 = vrot.lane.b32.xlu0 %v910, 64
    %v914 = vpop.permute.xlu0 %913
    %v916 = vmul.f32 %v908, %v914
    %918 = vrot.lane.b32.xlu0 %v916, 32
    %v919 = vpop.permute.xlu0 %918
    %v921 = vadd.f32 %v911, %v919
    %v922 = vtanh.pop %v921
    %924 = vrot.lane.b32.xlu0 %v922, 64
    %v925 = vpop.permute.xlu0 %924
    %v927 = vmul.f32 %v908, %v925
    %929 = vrot.lane.b32.xlu0 %v927, 32
    %v930 = vpop.permute.xlu0 %929
    %v931 = vsel %vm186, %v930, 0
    %933 = vmatpush.msra.mxu0 0.0
    %934 = vmatpush.msra.mxu0 0.0
    %935 = vmatpush.msra.mxu0 0.0
    %936 = vmatpush.msra.mxu0 0.0
    %937 = vmatpush.msra.mxu0 0.0
    %938 = vmatpush.msra.mxu0 0.0
    %939 = vmatpush.msra.mxu0 0.0
    %940 = vmatpush.msra.mxu0 0.0
    %941 = vmatpush.msra.mxu0 0.0
    %942 = vmatpush.msra.mxu0 0.0
    %943 = vmatpush.msra.mxu0 0.0
    %944 = vmatpush.msra.mxu0 0.0
    %945 = vmatpush.msra.mxu0 %v153
    %946 = vmatpush.msra.mxu0 %v152
    %947 = vmatpush.msra.mxu0 %v151
    %948 = vmatpush.msra.mxu0 %v150
    %949 = vmatmul.f32.gmra.mxu0 %v931
    %v950 = vpop.f32.mrf.mxu0
    %v951 = vadd.f32 %v154, %v950
    %952 = vdwg.mxu0
    %953 = vmatpush.msra.mxu0 0.0
    %954 = vmatpush.msra.mxu0 0.0
    %955 = vmatpush.msra.mxu0 0.0
    %956 = vmatpush.msra.mxu0 0.0
    %957 = vmatpush.msra.mxu0 0.0
    %958 = vmatpush.msra.mxu0 0.0
    %959 = vmatpush.msra.mxu0 0.0
    %960 = vmatpush.msra.mxu0 0.0
    %961 = vmatpush.msra.mxu0 0.0
    %962 = vmatpush.msra.mxu0 0.0
    %963 = vmatpush.msra.mxu0 0.0
    %964 = vmatpush.msra.mxu0 0.0
    %965 = vmatpush.msra.mxu0 %v145
    %966 = vmatpush.msra.mxu0 %v144
    %967 = vmatpush.msra.mxu0 %v143
    %968 = vmatpush.msra.mxu0 %v142
    %969 = vmatmul.f32.gmra.mxu0 %v868
    %v970 = vpop.f32.mrf.mxu0
    %v971 = vadd.f32 0.0, %v970
    %972 = vdwg.mxu0
    %v974 = vrot.slane %v971, 3
    %v976 = vadd.f32 %v184, %v974
    %v977 = vxor.u32 %v976, 2147483648
    %v978 = vmul.f32 %v977, 1.442695
    %v979 = vpow.pop %v978
    %v980 = vadd.f32 %v979, 1.0
    %v981 = vrcp.pop %v980
    %v982 = vmul.f32 %v980, %v981
    %v983 = vsub.f32 1.0, %v982
    %v984 = vmul.f32 %v981, %v983
    %v985 = vadd.f32 %v981, %v984
    %vm986 = vweird.f32 %v980
    %vm987 = vweird.f32 %v981
    %vm988 = vmor %vm986, %vm987
    %v989 = vsel %vm988, %v981, %v985
    %v990 = vand.u32 2147483647, %v980
    %vm991 = vcmp.eq.f32.partialorder %v990, 8.507059e+37
    %v992 = vand.u32 %v980, 2147483648
    %v993 = vor.u32 1.1754944e-38, %v992
    %v994 = vsel %vm991, %v993, %v989
    %v995 = vmul.f32 1.0, %v994
    %v996 = vmul.f32 %v995, 2.0
    %v997 = vsub.f32 %v996, 1.0
    %v999 = vrot.slane %v857, 7
    %v1001 = vmul.f32 %v995, %v999
    %1003 = vrot.lane.b32.xlu0 %v997, 64
    %v1004 = vpop.permute.xlu0 %1003
    %v1006 = vmul.f32 %v995, %v1004
    %1008 = vrot.lane.b32.xlu0 %v1006, 32
    %v1009 = vpop.permute.xlu0 %1008
    %v1011 = vadd.f32 %v1001, %v1009
    %v1012 = vtanh.pop %v1011
    %1014 = vrot.lane.b32.xlu0 %v1012, 64
    %v1015 = vpop.permute.xlu0 %1014
    %v1017 = vmul.f32 %v995, %v1015
    %v1019 = vrot.slane %v1017, 5
    %1020 = vrot.lane.b32.xlu0 %v1019, 32
    %v1021 = vpop.permute.xlu0 %1020
    %v1022 = vsel %vm186, %v1021, 0
    %1024 = vmatpush.msra.mxu0 0.0
    %1025 = vmatpush.msra.mxu0 0.0
    %1026 = vmatpush.msra.mxu0 0.0
    %1027 = vmatpush.msra.mxu0 0.0
    %1028 = vmatpush.msra.mxu0 0.0
    %1029 = vmatpush.msra.mxu0 0.0
    %1030 = vmatpush.msra.mxu0 0.0
    %1031 = vmatpush.msra.mxu0 0.0
    %1032 = vmatpush.msra.mxu0 0.0
    %1033 = vmatpush.msra.mxu0 0.0
    %1034 = vmatpush.msra.mxu0 0.0
    %1035 = vmatpush.msra.mxu0 0.0
    %1036 = vmatpush.msra.mxu0 %v149
    %1037 = vmatpush.msra.mxu0 %v148
    %1038 = vmatpush.msra.mxu0 %v147
    %1039 = vmatpush.msra.mxu0 %v146
    %1040 = vmatmul.f32.gmra.mxu0 %v1022
    %v1041 = vpop.f32.mrf.mxu0
    %v1042 = vadd.f32 %v951, %v1041
    %1043 = vdwg.mxu0
    %v1044 = vxor.u32 %v1042, 2147483648
    %v1045 = vmul.f32 %v1044, 1.442695
    %v1046 = vpow.pop %v1045
    %v1047 = vadd.f32 %v1046, 1.0
    %v1048 = vrcp.pop %v1047
    %v1049 = vmul.f32 %v1047, %v1048
    %v1050 = vsub.f32 1.0, %v1049
    %v1051 = vmul.f32 %v1048, %v1050
    %v1052 = vadd.f32 %v1048, %v1051
    %vm1053 = vweird.f32 %v1047
    %vm1054 = vweird.f32 %v1048
    %vm1055 = vmor %vm1053, %vm1054
    %v1056 = vsel %vm1055, %v1048, %v1052
    %v1057 = vand.u32 2147483647, %v1047
    %vm1058 = vcmp.eq.f32.partialorder %v1057, 8.507059e+37
    %v1059 = vand.u32 %v1047, 2147483648
    %v1060 = vor.u32 1.1754944e-38, %v1059
    %v1061 = vsel %vm1058, %v1060, %v1056
    %v1062 = vmul.f32 1.0, %v1061
    %v1063 = vmul.f32 %v1062, 2.0
    %v1064 = vsub.f32 %v1063, 1.0
    %v1065 = vmul.f32 %v1062, %v921
    %1067 = vrot.lane.b32.xlu0 %v1064, 64
    %v1068 = vpop.permute.xlu0 %1067
    %v1070 = vmul.f32 %v1062, %v1068
    %1072 = vrot.lane.b32.xlu0 %v1070, 32
    %v1073 = vpop.permute.xlu0 %1072
    %v1075 = vadd.f32 %v1065, %v1073
    %v1076 = vtanh.pop %v1075
    %1078 = vrot.lane.b32.xlu0 %v1076, 64
    %v1079 = vpop.permute.xlu0 %1078
    %v1081 = vmul.f32 %v1062, %v1079
    %1083 = vrot.lane.b32.xlu0 %v1081, 32
    %v1084 = vpop.permute.xlu0 %1083
    %v1085 = vsel %vm186, %v1084, 0
    %1087 = vmatpush.msra.mxu0 0.0
    %1088 = vmatpush.msra.mxu0 0.0
    %1089 = vmatpush.msra.mxu0 0.0
    %1090 = vmatpush.msra.mxu0 0.0
    %1091 = vmatpush.msra.mxu0 0.0
    %1092 = vmatpush.msra.mxu0 0.0
    %1093 = vmatpush.msra.mxu0 0.0
    %1094 = vmatpush.msra.mxu0 0.0
    %1095 = vmatpush.msra.mxu0 0.0
    %1096 = vmatpush.msra.mxu0 0.0
    %1097 = vmatpush.msra.mxu0 0.0
    %1098 = vmatpush.msra.mxu0 0.0
    %1099 = vmatpush.msra.mxu0 %v153
    %1100 = vmatpush.msra.mxu0 %v152
    %1101 = vmatpush.msra.mxu0 %v151
    %1102 = vmatpush.msra.mxu0 %v150
    %1103 = vmatmul.f32.gmra.mxu0 %v1085
    %v1104 = vpop.f32.mrf.mxu0
    %v1105 = vadd.f32 %v154, %v1104
    %1106 = vdwg.mxu0
    %1107 = vmatpush.msra.mxu0 0.0
    %1108 = vmatpush.msra.mxu0 0.0
    %1109 = vmatpush.msra.mxu0 0.0
    %1110 = vmatpush.msra.mxu0 0.0
    %1111 = vmatpush.msra.mxu0 0.0
    %1112 = vmatpush.msra.mxu0 0.0
    %1113 = vmatpush.msra.mxu0 0.0
    %1114 = vmatpush.msra.mxu0 0.0
    %1115 = vmatpush.msra.mxu0 0.0
    %1116 = vmatpush.msra.mxu0 0.0
    %1117 = vmatpush.msra.mxu0 0.0
    %1118 = vmatpush.msra.mxu0 0.0
    %1119 = vmatpush.msra.mxu0 %v145
    %1120 = vmatpush.msra.mxu0 %v144
    %1121 = vmatpush.msra.mxu0 %v143
    %1122 = vmatpush.msra.mxu0 %v142
    %1123 = vmatmul.f32.gmra.mxu0 %v1022
    %v1124 = vpop.f32.mrf.mxu0
    %v1125 = vadd.f32 0.0, %v1124
    %1126 = vdwg.mxu0
    %v1128 = vrot.slane %v1125, 2
    %v1130 = vadd.f32 %v184, %v1128
    %v1131 = vxor.u32 %v1130, 2147483648
    %v1132 = vmul.f32 %v1131, 1.442695
    %v1133 = vpow.pop %v1132
    %v1134 = vadd.f32 %v1133, 1.0
    %v1135 = vrcp.pop %v1134
    %v1136 = vmul.f32 %v1134, %v1135
    %v1137 = vsub.f32 1.0, %v1136
    %v1138 = vmul.f32 %v1135, %v1137
    %v1139 = vadd.f32 %v1135, %v1138
    %vm1140 = vweird.f32 %v1134
    %vm1141 = vweird.f32 %v1135
    %vm1142 = vmor %vm1140, %vm1141
    %v1143 = vsel %vm1142, %v1135, %v1139
    %v1144 = vand.u32 2147483647, %v1134
    %vm1145 = vcmp.eq.f32.partialorder %v1144, 8.507059e+37
    %v1146 = vand.u32 %v1134, 2147483648
    %v1147 = vor.u32 1.1754944e-38, %v1146
    %v1148 = vsel %vm1145, %v1147, %v1143
    %v1149 = vmul.f32 1.0, %v1148
    %v1150 = vmul.f32 %v1149, 2.0
    %v1151 = vsub.f32 %v1150, 1.0
    %v1153 = vrot.slane %v1011, 7
    %v1155 = vmul.f32 %v1149, %v1153
    %1157 = vrot.lane.b32.xlu0 %v1151, 64
    %v1158 = vpop.permute.xlu0 %1157
    %v1160 = vmul.f32 %v1149, %v1158
    %1162 = vrot.lane.b32.xlu0 %v1160, 32
    %v1163 = vpop.permute.xlu0 %1162
    %v1165 = vadd.f32 %v1155, %v1163
    %v1166 = vtanh.pop %v1165
    %1168 = vrot.lane.b32.xlu0 %v1166, 64
    %v1169 = vpop.permute.xlu0 %1168
    %v1171 = vmul.f32 %v1149, %v1169
    %v1173 = vrot.slane %v1171, 6
    %1174 = vrot.lane.b32.xlu0 %v1173, 32
    %v1175 = vpop.permute.xlu0 %1174
    %v1176 = vsel %vm186, %v1175, 0
    %1178 = vmatpush.msra.mxu0 0.0
    %1179 = vmatpush.msra.mxu0 0.0
    %1180 = vmatpush.msra.mxu0 0.0
    %1181 = vmatpush.msra.mxu0 0.0
    %1182 = vmatpush.msra.mxu0 0.0
    %1183 = vmatpush.msra.mxu0 0.0
    %1184 = vmatpush.msra.mxu0 0.0
    %1185 = vmatpush.msra.mxu0 0.0
    %1186 = vmatpush.msra.mxu0 0.0
    %1187 = vmatpush.msra.mxu0 0.0
    %1188 = vmatpush.msra.mxu0 0.0
    %1189 = vmatpush.msra.mxu0 0.0
    %1190 = vmatpush.msra.mxu0 %v149
    %1191 = vmatpush.msra.mxu0 %v148
    %1192 = vmatpush.msra.mxu0 %v147
    %1193 = vmatpush.msra.mxu0 %v146
    %1194 = vmatmul.f32.gmra.mxu0 %v1176
    %v1195 = vpop.f32.mrf.mxu0
    %v1196 = vadd.f32 %v1105, %v1195
    %1197 = vdwg.mxu0
    %v1198 = vxor.u32 %v1196, 2147483648
    %v1199 = vmul.f32 %v1198, 1.442695
    %v1200 = vpow.pop %v1199
    %v1201 = vadd.f32 %v1200, 1.0
    %v1202 = vrcp.pop %v1201
    %v1203 = vmul.f32 %v1201, %v1202
    %v1204 = vsub.f32 1.0, %v1203
    %v1205 = vmul.f32 %v1202, %v1204
    %v1206 = vadd.f32 %v1202, %v1205
    %vm1207 = vweird.f32 %v1201
    %vm1208 = vweird.f32 %v1202
    %vm1209 = vmor %vm1207, %vm1208
    %v1210 = vsel %vm1209, %v1202, %v1206
    %v1211 = vand.u32 2147483647, %v1201
    %vm1212 = vcmp.eq.f32.partialorder %v1211, 8.507059e+37
    %v1213 = vand.u32 %v1201, 2147483648
    %v1214 = vor.u32 1.1754944e-38, %v1213
    %v1215 = vsel %vm1212, %v1214, %v1210
    %v1216 = vmul.f32 1.0, %v1215
    %v1217 = vmul.f32 %v1216, 2.0
    %v1218 = vsub.f32 %v1217, 1.0
    %v1219 = vmul.f32 %v1216, %v1075
    %1221 = vrot.lane.b32.xlu0 %v1218, 64
    %v1222 = vpop.permute.xlu0 %1221
    %v1224 = vmul.f32 %v1216, %v1222
    %1226 = vrot.lane.b32.xlu0 %v1224, 32
    %v1227 = vpop.permute.xlu0 %1226
    %v1229 = vadd.f32 %v1219, %v1227
    %v1230 = vtanh.pop %v1229
    %1232 = vrot.lane.b32.xlu0 %v1230, 64
    %v1233 = vpop.permute.xlu0 %1232
    %v1235 = vmul.f32 %v1216, %v1233
    %1237 = vrot.lane.b32.xlu0 %v1235, 32
    %v1238 = vpop.permute.xlu0 %1237
    %v1239 = vsel %vm186, %v1238, 0
    %1241 = vmatpush.msra.mxu0 0.0
    %1242 = vmatpush.msra.mxu0 0.0
    %1243 = vmatpush.msra.mxu0 0.0
    %1244 = vmatpush.msra.mxu0 0.0
    %1245 = vmatpush.msra.mxu0 0.0
    %1246 = vmatpush.msra.mxu0 0.0
    %1247 = vmatpush.msra.mxu0 0.0
    %1248 = vmatpush.msra.mxu0 0.0
    %1249 = vmatpush.msra.mxu0 0.0
    %1250 = vmatpush.msra.mxu0 0.0
    %1251 = vmatpush.msra.mxu0 0.0
    %1252 = vmatpush.msra.mxu0 0.0
    %1253 = vmatpush.msra.mxu0 %v153
    %1254 = vmatpush.msra.mxu0 %v152
    %1255 = vmatpush.msra.mxu0 %v151
    %1256 = vmatpush.msra.mxu0 %v150
    %1257 = vmatmul.f32.gmra.mxu0 %v1239
    %v1258 = vpop.f32.mrf.mxu0
    %v1259 = vadd.f32 %v154, %v1258
    %1260 = vdwg.mxu0
    %1261 = vmatpush.msra.mxu0 0.0
    %1262 = vmatpush.msra.mxu0 0.0
    %1263 = vmatpush.msra.mxu0 0.0
    %1264 = vmatpush.msra.mxu0 0.0
    %1265 = vmatpush.msra.mxu0 0.0
    %1266 = vmatpush.msra.mxu0 0.0
    %1267 = vmatpush.msra.mxu0 0.0
    %1268 = vmatpush.msra.mxu0 0.0
    %1269 = vmatpush.msra.mxu0 0.0
    %1270 = vmatpush.msra.mxu0 0.0
    %1271 = vmatpush.msra.mxu0 0.0
    %1272 = vmatpush.msra.mxu0 0.0
    %1273 = vmatpush.msra.mxu0 %v145
    %1274 = vmatpush.msra.mxu0 %v144
    %1275 = vmatpush.msra.mxu0 %v143
    %1276 = vmatpush.msra.mxu0 %v142
    %1277 = vmatmul.f32.gmra.mxu0 %v1176
    %v1278 = vpop.f32.mrf.mxu0
    %v1279 = vadd.f32 0.0, %v1278
    %1280 = vdwg.mxu0
    %v1282 = vrot.slane %v1279, 1
    %v1284 = vadd.f32 %v184, %v1282
    %v1285 = vxor.u32 %v1284, 2147483648
    %v1286 = vmul.f32 %v1285, 1.442695
    %v1287 = vpow.pop %v1286
    %v1288 = vadd.f32 %v1287, 1.0
    %v1289 = vrcp.pop %v1288
    %v1290 = vmul.f32 %v1288, %v1289
    %v1291 = vsub.f32 1.0, %v1290
    %v1292 = vmul.f32 %v1289, %v1291
    %v1293 = vadd.f32 %v1289, %v1292
    %vm1294 = vweird.f32 %v1288
    %vm1295 = vweird.f32 %v1289
    %vm1296 = vmor %vm1294, %vm1295
    %v1297 = vsel %vm1296, %v1289, %v1293
    %v1298 = vand.u32 2147483647, %v1288
    %vm1299 = vcmp.eq.f32.partialorder %v1298, 8.507059e+37
    %v1300 = vand.u32 %v1288, 2147483648
    %v1301 = vor.u32 1.1754944e-38, %v1300
    %v1302 = vsel %vm1299, %v1301, %v1297
    %v1303 = vmul.f32 1.0, %v1302
    %v1304 = vmul.f32 %v1303, 2.0
    %v1305 = vsub.f32 %v1304, 1.0
    %v1307 = vrot.slane %v1165, 7
    %v1309 = vmul.f32 %v1303, %v1307
    %1311 = vrot.lane.b32.xlu0 %v1305, 64
    %v1312 = vpop.permute.xlu0 %1311
    %v1314 = vmul.f32 %v1303, %v1312
    %1316 = vrot.lane.b32.xlu0 %v1314, 32
    %v1317 = vpop.permute.xlu0 %1316
    %v1319 = vadd.f32 %v1309, %v1317
    %v1320 = vtanh.pop %v1319
    %1322 = vrot.lane.b32.xlu0 %v1320, 64
    %v1323 = vpop.permute.xlu0 %1322
    %v1325 = vmul.f32 %v1303, %v1323
    %v1327 = vrot.slane %v1325, 7
    %1328 = vrot.lane.b32.xlu0 %v1327, 32
    %v1329 = vpop.permute.xlu0 %1328
    %v1330 = vsel %vm186, %v1329, 0
    %1332 = vmatpush.msra.mxu0 0.0
    %1333 = vmatpush.msra.mxu0 0.0
    %1334 = vmatpush.msra.mxu0 0.0
    %1335 = vmatpush.msra.mxu0 0.0
    %1336 = vmatpush.msra.mxu0 0.0
    %1337 = vmatpush.msra.mxu0 0.0
    %1338 = vmatpush.msra.mxu0 0.0
    %1339 = vmatpush.msra.mxu0 0.0
    %1340 = vmatpush.msra.mxu0 0.0
    %1341 = vmatpush.msra.mxu0 0.0
    %1342 = vmatpush.msra.mxu0 0.0
    %1343 = vmatpush.msra.mxu0 0.0
    %1344 = vmatpush.msra.mxu0 %v149
    %1345 = vmatpush.msra.mxu0 %v148
    %1346 = vmatpush.msra.mxu0 %v147
    %1347 = vmatpush.msra.mxu0 %v146
    %1348 = vmatmul.f32.gmra.mxu0 %v1330
    %v1349 = vpop.f32.mrf.mxu0
    %v1350 = vadd.f32 %v1259, %v1349
    %1351 = vdwg.mxu0
    %v1352 = vxor.u32 %v1350, 2147483648
    %v1353 = vmul.f32 %v1352, 1.442695
    %v1354 = vpow.pop %v1353
    %v1355 = vadd.f32 %v1354, 1.0
    %v1356 = vrcp.pop %v1355
    %v1357 = vmul.f32 %v1355, %v1356
    %v1358 = vsub.f32 1.0, %v1357
    %v1359 = vmul.f32 %v1356, %v1358
    %v1360 = vadd.f32 %v1356, %v1359
    %vm1361 = vweird.f32 %v1355
    %vm1362 = vweird.f32 %v1356
    %vm1363 = vmor %vm1361, %vm1362
    %v1364 = vsel %vm1363, %v1356, %v1360
    %v1365 = vand.u32 2147483647, %v1355
    %vm1366 = vcmp.eq.f32.partialorder %v1365, 8.507059e+37
    %v1367 = vand.u32 %v1355, 2147483648
    %v1368 = vor.u32 1.1754944e-38, %v1367
    %v1369 = vsel %vm1366, %v1368, %v1364
    %v1370 = vmul.f32 1.0, %v1369
    %v1371 = vmul.f32 %v1370, 2.0
    %v1372 = vsub.f32 %v1371, 1.0
    %v1373 = vmul.f32 %v1370, %v1229
    %1375 = vrot.lane.b32.xlu0 %v1372, 64
    %v1376 = vpop.permute.xlu0 %1375
    %v1378 = vmul.f32 %v1370, %v1376
    %1380 = vrot.lane.b32.xlu0 %v1378, 32
    %v1381 = vpop.permute.xlu0 %1380
    %v1383 = vadd.f32 %v1373, %v1381
    %v1384 = vtanh.pop %v1383
    %1386 = vrot.lane.b32.xlu0 %v1384, 64
    %v1387 = vpop.permute.xlu0 %1386
    %v1389 = vmul.f32 %v1370, %v1387
    %v1390 = vrot.slane %v465, 7
    %v1392 = vrot.slane %v619, 6
    %v1394 = vrot.slane %v773, 5
    %v1396 = vrot.slane %v927, 4
    %v1398 = vrot.slane %v1081, 3
    %v1400 = vrot.slane %v1235, 2
    %v1403 = vrot.slane %v1389, 1
    %vm1405 = vcmask 1040384
    %v1406 = vsel %vm1405, %v311, %v1390
    %vm1407 = vcmask 1041408
    %v1408 = vsel %vm1407, %v1406, %v1392
    %vm1409 = vcmask 1042432
    %v1410 = vsel %vm1409, %v1408, %v1394
    %vm1411 = vcmask 1043456
    %v1412 = vsel %vm1411, %v1410, %v1396
    %vm1413 = vcmask 1044480
    %v1414 = vsel %vm1413, %v1412, %v1398
    %vm1415 = vcmask 1045504
    %v1416 = vsel %vm1415, %v1414, %v1400
    %vm1417 = vcmask 1046528
    %v1418 = vsel %vm1417, %v1416, %v1403
    %v1419 = vld [vmem:[#allocation11] sm:$0xff]
    %v1420 = vld [vmem:[#allocation11 + $0x8] sm:$0xff]
    %v1421 = vld [vmem:[#allocation11 + $0x10] sm:$0xff]
    %v1422 = vld [vmem:[#allocation11 + $0x18] sm:$0xff]
    %v1423 = vld [vmem:[#allocation13] sm:$0x1]
    %v1425 = vperm.slane %v1423, 0
    %1428 = vrot.lane.b32.xlu0 %v1418, 32
    %v1429 = vpop.permute.xlu0 %1428
    %v1430 = vsel %vm186, %v1429, 0
    %1432 = vmatpush.msra.mxu0 0.0
    %1433 = vmatpush.msra.mxu0 0.0
    %1434 = vmatpush.msra.mxu0 0.0
    %1435 = vmatpush.msra.mxu0 0.0
    %1436 = vmatpush.msra.mxu0 0.0
    %1437 = vmatpush.msra.mxu0 0.0
    %1438 = vmatpush.msra.mxu0 0.0
    %1439 = vmatpush.msra.mxu0 0.0
    %1440 = vmatpush.msra.mxu0 0.0
    %1441 = vmatpush.msra.mxu0 0.0
    %1442 = vmatpush.msra.mxu0 0.0
    %1443 = vmatpush.msra.mxu0 0.0
    %1444 = vmatpush.msra.mxu0 %v1422
    %1445 = vmatpush.msra.mxu0 %v1421
    %1446 = vmatpush.msra.mxu0 %v1420
    %1447 = vmatpush.msra.mxu0 %v1419
    %1448 = vmatmul.f32.gmra.mxu0 %v1430
    %v1449 = vpop.f32.mrf.mxu0
    %v1450 = vadd.f32 %v1425, %v1449
    %1451 = vdwg.mxu0
    %v1452 = vmax.f32 %v1450, 0.0
    %v1453 = vld [vmem:[%s9] sm:$0xff]
    %v1454 = vld [vmem:[%s9 + $0x8] sm:$0xff]
    %v1455 = vld [vmem:[%s9 + $0x10] sm:$0xff]
    %v1456 = vld [vmem:[%s9 + $0x18] sm:$0xff]
    %v1457 = vld [vmem:[%s10] sm:$0x1]
    %v1459 = vperm.slane %v1457, 0
    %v1462 = vsel %vm186, %v1452, 0
    %1464 = vmatpush.msra.mxu0 0.0
    %1465 = vmatpush.msra.mxu0 0.0
    %1466 = vmatpush.msra.mxu0 0.0
    %1467 = vmatpush.msra.mxu0 0.0
    %1468 = vmatpush.msra.mxu0 0.0
    %1469 = vmatpush.msra.mxu0 0.0
    %1470 = vmatpush.msra.mxu0 0.0
    %1471 = vmatpush.msra.mxu0 0.0
    %1472 = vmatpush.msra.mxu0 0.0
    %1473 = vmatpush.msra.mxu0 0.0
    %1474 = vmatpush.msra.mxu0 0.0
    %1475 = vmatpush.msra.mxu0 0.0
    %1476 = vmatpush.msra.mxu0 %v1456
    %1477 = vmatpush.msra.mxu0 %v1455
    %1478 = vmatpush.msra.mxu0 %v1454
    %1479 = vmatpush.msra.mxu0 %v1453
    %1480 = vmatmul.f32.gmra.mxu0 %v1462
    %v1481 = vpop.f32.mrf.mxu0
    %v1482 = vadd.f32 %v1459, %v1481
    %1483 = vdwg.mxu0
    %vm1484 = vcmask 64512
    %1485 = vst.msk [vmem:[#allocation14] sm:$0xff] %vm1484, %v1482
    // Predicated region
    $region74: #{tpu_custom_call.1} parent=1 // pred_check
      _
    $region75: #{tpu_custom_call.1} parent=1 // pred_check_branch
      %1487 = sbr.rel (0) target = $region77
    $region76: #{tpu_custom_call.1} parent=1 // pred_region
      %1489 = vsyncadd [#allocation4], 0
      %s1491 = sshll.u32 [#allocation14], 4
      %s1492 = int_to_ptr.vmem [resolvable:$true] %s1491
      %s1493 = sshll.u32 %s11, 4
      %s1494 = int_to_ptr.hbm [resolvable:$true] %s1493
      %1496 = dma.vmem_to_hbm [thread:$0]  %s1492, 128, %s1494, [#allocation4]
    $region77: #{tpu_custom_call.1} parent=1 // pred_fallthru
      _
    // Predicated region
    $region78: #{tpu_custom_call.1} parent=1 // pred_check
      _
    $region79: #{tpu_custom_call.1} parent=1 // pred_check_branch
      %1498 = sbr.rel (0) target = $region81
    $region80: #{tpu_custom_call.1} parent=1 // pred_region
      %1500 = dma.done [#allocation4], 128
    $region81: #{tpu_custom_call.1} parent=1 // pred_fallthru
      _
    %1501 = vsyncpa [#allocation3], 1
    %1502 = vsyncpa [#allocation6], 1
    %1503 = vsyncpa [#allocation9], 1
    %1504 = vsyncpa [#allocation12], 1
    %1505 = vsyncpa [#allocation4], 1

</llo_original>
